<compile_context>
chip_gen: v7x
topology: tpu7x:2x2x1
jax: 0.10.0
libtpu: 0.0.40
codegen_flags: <defaults>
</compile_context>

<pallas_src>
import functools

import jax
import jax.numpy as jnp
from jax.experimental import pallas as pl
from jax.experimental.pallas import tpu as pltpu

LANE = 128
HALF = 64           # lane offset of logits inside the packed softmax/logits slab
IN_FEATURES = 784
H1 = 100
H2 = 100
OUT = 10
TILE_B_DEFAULT = 1024


def _round_up(n, m):
    return ((n + m - 1) // m) * m


# ----------------------------------------------------------------------------
# Kernels
# ----------------------------------------------------------------------------
def mlp_b_kernel(x_ref, w1_ref, b1_ref, w2_ref, b2_ref, w3_ref, b3_ref,
                 smlog_ref, fc1_ref, fc2_ref):
    # x: (TILE_B, 784) f32 streamed in; cast to bf16 here (hidden under DMA).
    x = x_ref[...].astype(jnp.bfloat16)

    # fc1 = x @ W1 + b1   (MXU bf16 operands -> f32 accumulate)
    fc1 = jnp.dot(x, w1_ref[...], preferred_element_type=jnp.float32) + b1_ref[...]
    fc1_ref[...] = fc1                                   # lane-dense f32 store
    h1 = jnp.maximum(fc1, 0.0).astype(jnp.bfloat16)      # padded lanes stay 0

    fc2 = jnp.dot(h1, w2_ref[...], preferred_element_type=jnp.float32) + b2_ref[...]
    fc2_ref[...] = fc2
    h2 = jnp.maximum(fc2, 0.0).astype(jnp.bfloat16)

    logits = jnp.dot(h2, w3_ref[...], preferred_element_type=jnp.float32) + b3_ref[...]

    # Numerically-stable softmax over the 10 real lanes only (mask the pads).
    lane = jax.lax.broadcasted_iota(jnp.int32, logits.shape, dimension=1)
    valid = lane < OUT
    m = jnp.max(jnp.where(valid, logits, -jnp.inf), axis=-1, keepdims=True)
    e = jnp.where(valid, jnp.exp(logits - m), 0.0)
    denom = jnp.sum(e, axis=-1, keepdims=True)
    r = pl.reciprocal(denom, approx=True)
    r = r * (2.0 - denom * r)          # one Newton step -> near-exact normalization
    sm = e * r

    # Pack softmax (lanes 0..63) and logits (lanes 64..127) into one 128-wide
    # slab so the sm/logits writeback is a single unmasked lane-dense store.
    smlog_ref[...] = jnp.concatenate([sm[:, :HALF], logits[:, :HALF]], axis=-1)


def mlp_b_logits_kernel(x_ref, w1_ref, b1_ref, w2_ref, b2_ref, w3_ref, b3_ref,
                        logits_ref):
    # logit_only path: no softmax, no fc1/fc2 stores -> 1 output slab only.
    x = x_ref[...].astype(jnp.bfloat16)
    h1 = jnp.maximum(
        jnp.dot(x, w1_ref[...], preferred_element_type=jnp.float32) + b1_ref[...],
        0.0).astype(jnp.bfloat16)
    h2 = jnp.maximum(
        jnp.dot(h1, w2_ref[...], preferred_element_type=jnp.float32) + b2_ref[...],
        0.0).astype(jnp.bfloat16)
    logits_ref[...] = (
        jnp.dot(h2, w3_ref[...], preferred_element_type=jnp.float32) + b3_ref[...])


# ----------------------------------------------------------------------------
# Parameter packing (one-time, outside the hot path)
# ----------------------------------------------------------------------------
def pack_params(params):
    """Pad params to lane-dense 128-wide layouts and cast MXU operands to bf16.

    Input params: (w1 (784,100), b1 (100,), w2 (100,100), b2 (100,),
                   w3 (100,10),  b3 (10,)) in float32, stored as (in, out).
    """
    w1, b1, w2, b2, w3, b3 = params

    def pad_w(w, rows, cols):
        out = jnp.zeros((rows, cols), jnp.float32)
        out = out.at[: w.shape[0], : w.shape[1]].set(w.astype(jnp.float32))
        return out.astype(jnp.bfloat16)

    def pad_b(b, cols):
        b = jnp.asarray(b, jnp.float32).reshape(1, -1)
        out = jnp.zeros((1, cols), jnp.float32)
        return out.at[:, : b.shape[1]].set(b)

    return (pad_w(w1, IN_FEATURES, LANE), pad_b(b1, LANE),
            pad_w(w2, LANE, LANE),        pad_b(b2, LANE),
            pad_w(w3, LANE, LANE),        pad_b(b3, LANE))


# ----------------------------------------------------------------------------
# Forward wrapper
# ----------------------------------------------------------------------------
@functools.partial(jax.jit,
                   static_argnames=("tile_b", "logit_only", "padded_outputs"))
def mlp_b_forward(x, packed_params, tile_b=TILE_B_DEFAULT, logit_only=False,
                  padded_outputs=False):
    """x: (bs, 1, 28, 28) or (bs, 784) float32.

    Default (padded_outputs=False) matches the PyTorch module:
      logit_only=False -> (softmax (bs,10), logits (bs,10),
                           {'fc1': (bs,100), 'fc2': (bs,100)})
      logit_only=True  -> logits (bs,10)

    padded_outputs=True returns the raw lane-dense slabs to defer the narrow
    column slices to the consumer:
      full:        (smlog (bs,128) [sm @ lanes 0..9, logits @ lanes 64..73],
                    fc1 (bs,128), fc2 (bs,128))
      logit_only:  logits slab (bs,128) [valid lanes 0..9]
    """
    bs = x.shape[0]
    x2d = x.reshape(bs, -1)            # x.view(bs, -1); stays f32 (cast in-kernel)

    # Batch tile: 8-aligned (f32 feed), capped so the grid has >=2 steps when
    # possible (v7x megacore), never larger than the requested tile_b.
    half = _round_up(max(pl.cdiv(bs, 2), 1), 8)
    tile_b = max(8, min(tile_b, half))
    grid = (pl.cdiv(bs, tile_b),)       # no wrapper pad: Pallas masks the remainder

    w1, b1, w2, b2, w3, b3 = packed_params

    x_spec = pl.BlockSpec((tile_b, IN_FEATURES), lambda i: (i, 0))
    out_spec = pl.BlockSpec((tile_b, LANE), lambda i: (i, 0))

    def resident(shape):                # VMEM-resident across the whole grid
        return pl.BlockSpec(shape, lambda i: (0, 0))

    weight_specs = [
        resident((IN_FEATURES, LANE)), resident((1, LANE)),
        resident((LANE, LANE)),        resident((1, LANE)),
        resident((LANE, LANE)),        resident((1, LANE)),
    ]

    compiler_params = pltpu.CompilerParams(
        dimension_semantics=("parallel",),           # megacore-shard the batch
        vmem_limit_bytes=32 * 1024 * 1024,           # ~10 MiB live at TILE_B=1024
    )

    if logit_only:
        logits_pad = pl.pallas_call(
            mlp_b_logits_kernel,
            out_shape=jax.ShapeDtypeStruct((bs, LANE), jnp.float32),
            grid=grid,
            in_specs=[x_spec] + weight_specs,
            out_specs=out_spec,
            compiler_params=compiler_params,
        )(x2d, w1, b1, w2, b2, w3, b3)
        if padded_outputs:
            return logits_pad
        return logits_pad[:, :OUT]

    smlog, fc1_pad, fc2_pad = pl.pallas_call(
        mlp_b_kernel,
        out_shape=(jax.ShapeDtypeStruct((bs, LANE), jnp.float32),   # sm | logits
                   jax.ShapeDtypeStruct((bs, LANE), jnp.float32),   # fc1 preact
                   jax.ShapeDtypeStruct((bs, LANE), jnp.float32)),  # fc2 preact
        grid=grid,
        in_specs=[x_spec] + weight_specs,
        out_specs=(out_spec, out_spec, out_spec),
        compiler_params=compiler_params,
    )(x2d, w1, b1, w2, b2, w3, b3)

    if padded_outputs:
        return smlog, fc1_pad, fc2_pad

    softmax = smlog[:, :OUT]
    logits = smlog[:, HALF:HALF + OUT]
    fc1 = fc1_pad[:, :H1]
    fc2 = fc2_pad[:, :H2]
    return softmax, logits, {"fc1": fc1, "fc2": fc2}


# ----------------------------------------------------------------------------
# Init (mimics nn.Linear default: uniform +-1/sqrt(fan_in)); weights as (in,out)
# so y = x @ W + b == PyTorch x @ W.T + b.
# ----------------------------------------------------------------------------
def init_params(key):
    def linear(key, fan_in, fan_out):
        kw, kb = jax.random.split(key)
        bound = 1.0 / jnp.sqrt(fan_in)
        w = jax.random.uniform(kw, (fan_in, fan_out), jnp.float32, -bound, bound)
        b = jax.random.uniform(kb, (fan_out,), jnp.float32, -bound, bound)
        return w, b

    k1, k2, k3 = jax.random.split(key, 3)
    w1, b1 = linear(k1, 784, 100)
    w2, b2 = linear(k2, 100, 100)
    w3, b3 = linear(k3, 100, 10)
    return (w1, b1, w2, b2, w3, b3)


if __name__ == "__main__":
    key = jax.random.PRNGKey(0)
    kx, kp = jax.random.split(key)

    # bs=20 deliberately exercises the un-padded remainder path (tile_b=16,
    # grid=2, partial last block of 4 rows).
    bs = 20
    x = jax.random.normal(kx, (bs, 1, 28, 28), jnp.float32)   # MNIST-like input
    raw_params = init_params(kp)
    packed = pack_params(raw_params)                          # one-time pad + bf16

    softmax_out, logits_out, acts = mlp_b_forward(x, packed)
    logits_only_out = mlp_b_forward(x, packed, logit_only=True)
    jax.block_until_ready((softmax_out, logits_out, acts, logits_only_out))

    # sanity checks vs. plain-JAX f32 reference (kernel uses bf16 MXU operands,
    # so tolerances are loosened accordingly)
    x2d = x.reshape(bs, -1)
    w1, b1, w2, b2, w3, b3 = raw_params
    fc1_ref = x2d @ w1 + b1
    fc2_ref = jnp.maximum(fc1_ref, 0.0) @ w2 + b2
    logits_ref = jnp.maximum(fc2_ref, 0.0) @ w3 + b3
    sm_ref = jax.nn.softmax(logits_ref, axis=-1)

    assert acts["fc1"].shape == (bs, 100) and acts["fc2"].shape == (bs, 100)
    assert logits_out.shape == (bs, 10) and softmax_out.shape == (bs, 10)
    assert logits_only_out.shape == (bs, 10)
    assert jnp.allclose(acts["fc1"], fc1_ref, atol=3e-2, rtol=3e-2)
    assert jnp.allclose(acts["fc2"], fc2_ref, atol=3e-2, rtol=3e-2)
    assert jnp.allclose(logits_out, logits_ref, atol=3e-2, rtol=3e-2)
    assert jnp.allclose(logits_only_out, logits_out, atol=1e-5)
    assert jnp.allclose(softmax_out, sm_ref, atol=2e-2)
    assert jnp.allclose(jnp.sum(softmax_out, axis=-1), 1.0, atol=1e-3)

    print("KERNEL_OK")
</pallas_src>

<mosaic_0001>
module attributes {stable_mosaic.version = 11 : i64} {
  func.func @mlp_b_kernel(%arg0: i32, %arg1: memref<16x784xf32, #tpu.memory_space<vmem>>, %arg2: memref<784x128xbf16, #tpu.memory_space<vmem>>, %arg3: memref<1x128xf32, #tpu.memory_space<vmem>>, %arg4: memref<128x128xbf16, #tpu.memory_space<vmem>>, %arg5: memref<1x128xf32, #tpu.memory_space<vmem>>, %arg6: memref<128x128xbf16, #tpu.memory_space<vmem>>, %arg7: memref<1x128xf32, #tpu.memory_space<vmem>>, %arg8: memref<16x128xf32, #tpu.memory_space<vmem>>, %arg9: memref<16x128xf32, #tpu.memory_space<vmem>>, %arg10: memref<16x128xf32, #tpu.memory_space<vmem>>) attributes {dimension_semantics = [#tpu.dimension_semantics<parallel>], iteration_bounds = array<i64: 2>, scalar_prefetch = 0 : i64, scratch_operands = 0 : i64, tpu.core_type = #tpu.core_type<tc>, window_params = [{transform_indices = @transform_0, window_bounds = array<i64: 16, 784>}, {pipeline_mode = #tpu.pipeline_mode<synchronous>, transform_indices = @transform_1, window_bounds = array<i64: 784, 128>}, {pipeline_mode = #tpu.pipeline_mode<synchronous>, transform_indices = @transform_2, window_bounds = array<i64: 1, 128>}, {pipeline_mode = #tpu.pipeline_mode<synchronous>, transform_indices = @transform_3, window_bounds = array<i64: 128, 128>}, {pipeline_mode = #tpu.pipeline_mode<synchronous>, transform_indices = @transform_4, window_bounds = array<i64: 1, 128>}, {pipeline_mode = #tpu.pipeline_mode<synchronous>, transform_indices = @transform_5, window_bounds = array<i64: 128, 128>}, {pipeline_mode = #tpu.pipeline_mode<synchronous>, transform_indices = @transform_6, window_bounds = array<i64: 1, 128>}, {transform_indices = @transform_7, window_bounds = array<i64: 16, 128>}, {transform_indices = @transform_8, window_bounds = array<i64: 16, 128>}, {transform_indices = @transform_9, window_bounds = array<i64: 16, 128>}]} {
    %c0 = arith.constant 0 : index
    %c0_0 = arith.constant 0 : index
    %0 = vector.load %arg1[%c0, %c0_0] : memref<16x784xf32, #tpu.memory_space<vmem>>, vector<16x784xf32>
    %1 = arith.truncf %0 : vector<16x784xf32> to vector<16x784xbf16>
    %c0_1 = arith.constant 0 : index
    %c0_2 = arith.constant 0 : index
    %2 = vector.load %arg2[%c0_1, %c0_2] : memref<784x128xbf16, #tpu.memory_space<vmem>>, vector<784x128xbf16>
    %cst = arith.constant dense<0.000000e+00> : vector<16x128xf32>
    %3 = tpu.matmul %1, %2, %cst {dimension_numbers = #tpu.dot_dimension_numbers<[1], [0], [0], [1], [0, 0, 1, 1], [], []>} : vector<16x784xbf16>, vector<784x128xbf16>, vector<16x128xf32> -> vector<16x128xf32>
    %c0_3 = arith.constant 0 : index
    %c0_4 = arith.constant 0 : index
    %4 = vector.load %arg3[%c0_3, %c0_4] : memref<1x128xf32, #tpu.memory_space<vmem>>, vector<1x128xf32>
    %5 = vector.broadcast %4 : vector<1x128xf32> to vector<16x128xf32>
    %6 = arith.addf %3, %5 : vector<16x128xf32>
    %c0_5 = arith.constant 0 : index
    %c0_6 = arith.constant 0 : index
    %7 = vector.load %arg9[%c0_5, %c0_6] : memref<16x128xf32, #tpu.memory_space<vmem>>, vector<16x128xf32>
    tpu.vector_store %arg9[%c0_5, %c0_6], %6 {strides = array<i32>} : memref<16x128xf32, #tpu.memory_space<vmem>>, vector<16x128xf32>,
    %cst_7 = arith.constant 0.000000e+00 : f32
    %8 = vector.broadcast %cst_7 : f32 to vector<16x128xf32>
    %9 = arith.maximumf %6, %8 : vector<16x128xf32>
    %10 = arith.truncf %9 : vector<16x128xf32> to vector<16x128xbf16>
    %c0_8 = arith.constant 0 : index
    %c0_9 = arith.constant 0 : index
    %11 = vector.load %arg4[%c0_8, %c0_9] : memref<128x128xbf16, #tpu.memory_space<vmem>>, vector<128x128xbf16>
    %cst_10 = arith.constant dense<0.000000e+00> : vector<16x128xf32>
    %12 = tpu.matmul %10, %11, %cst_10 {dimension_numbers = #tpu.dot_dimension_numbers<[1], [0], [0], [1], [0, 0, 1, 1], [], []>} : vector<16x128xbf16>, vector<128x128xbf16>, vector<16x128xf32> -> vector<16x128xf32>
    %c0_11 = arith.constant 0 : index
    %c0_12 = arith.constant 0 : index
    %13 = vector.load %arg5[%c0_11, %c0_12] : memref<1x128xf32, #tpu.memory_space<vmem>>, vector<1x128xf32>
    %14 = vector.broadcast %13 : vector<1x128xf32> to vector<16x128xf32>
    %15 = arith.addf %12, %14 : vector<16x128xf32>
    %c0_13 = arith.constant 0 : index
    %c0_14 = arith.constant 0 : index
    %16 = vector.load %arg10[%c0_13, %c0_14] : memref<16x128xf32, #tpu.memory_space<vmem>>, vector<16x128xf32>
    tpu.vector_store %arg10[%c0_13, %c0_14], %15 {strides = array<i32>} : memref<16x128xf32, #tpu.memory_space<vmem>>, vector<16x128xf32>,
    %cst_15 = arith.constant 0.000000e+00 : f32
    %17 = vector.broadcast %cst_15 : f32 to vector<16x128xf32>
    %18 = arith.maximumf %15, %17 : vector<16x128xf32>
    %19 = arith.truncf %18 : vector<16x128xf32> to vector<16x128xbf16>
    %c0_16 = arith.constant 0 : index
    %c0_17 = arith.constant 0 : index
    %20 = vector.load %arg6[%c0_16, %c0_17] : memref<128x128xbf16, #tpu.memory_space<vmem>>, vector<128x128xbf16>
    %cst_18 = arith.constant dense<0.000000e+00> : vector<16x128xf32>
    %21 = tpu.matmul %19, %20, %cst_18 {dimension_numbers = #tpu.dot_dimension_numbers<[1], [0], [0], [1], [0, 0, 1, 1], [], []>} : vector<16x128xbf16>, vector<128x128xbf16>, vector<16x128xf32> -> vector<16x128xf32>
    %c0_19 = arith.constant 0 : index
    %c0_20 = arith.constant 0 : index
    %22 = vector.load %arg7[%c0_19, %c0_20] : memref<1x128xf32, #tpu.memory_space<vmem>>, vector<1x128xf32>
    %23 = vector.broadcast %22 : vector<1x128xf32> to vector<16x128xf32>
    %24 = arith.addf %21, %23 : vector<16x128xf32>
    %25 = tpu.iota {dimensions = array<i32: 1>} : vector<16x128xi32>
    %c10_i32 = arith.constant 10 : i32
    %26 = vector.broadcast %c10_i32 : i32 to vector<16x128xi32>
    %27 = arith.cmpi slt, %25, %26 : vector<16x128xi32>
    %cst_21 = arith.constant 0xFF800000 : f32
    %28 = vector.broadcast %cst_21 : f32 to vector<16x128xf32>
    %29 = arith.select %27, %24, %28 : vector<16x128xi1>, vector<16x128xf32>
    %cst_22 = arith.constant dense<0xFF800000> : vector<16xf32>
    %30 = vector.multi_reduction <maximumf>, %29, %cst_22 [1] : vector<16x128xf32> to vector<16xf32>
    %31 = vector.shape_cast %30 : vector<16xf32> to vector<16x1xf32>
    %32 = vector.broadcast %31 : vector<16x1xf32> to vector<16x128xf32>
    %33 = arith.subf %24, %32 : vector<16x128xf32>
    %34 = math.exp %33 : vector<16x128xf32>
    %cst_23 = arith.constant 0.000000e+00 : f32
    %35 = vector.broadcast %cst_23 : f32 to vector<16x128xf32>
    %36 = arith.select %27, %34, %35 : vector<16x128xi1>, vector<16x128xf32>
    %cst_24 = arith.constant dense<0.000000e+00> : vector<16xf32>
    %37 = vector.multi_reduction <add>, %36, %cst_24 [1] : vector<16x128xf32> to vector<16xf32>
    %38 = vector.shape_cast %37 : vector<16xf32> to vector<16x1xf32>
    %39 = tpu.reciprocal %38 {approx = true} : vector<16x1xf32> -> vector<16x1xf32>
    %40 = arith.mulf %38, %39 : vector<16x1xf32>
    %cst_25 = arith.constant 2.000000e+00 : f32
    %41 = vector.broadcast %cst_25 : f32 to vector<16x1xf32>
    %42 = arith.subf %41, %40 : vector<16x1xf32>
    %43 = arith.mulf %39, %42 : vector<16x1xf32>
    %44 = vector.broadcast %43 : vector<16x1xf32> to vector<16x128xf32>
    %45 = arith.mulf %36, %44 : vector<16x128xf32>
    %46 = vector.extract_strided_slice %45 {offsets = [0, 0], sizes = [16, 64], strides = [1, 1]} : vector<16x128xf32> to vector<16x64xf32>
    %47 = vector.extract_strided_slice %24 {offsets = [0, 0], sizes = [16, 64], strides = [1, 1]} : vector<16x128xf32> to vector<16x64xf32>
    %48 = tpu.concatenate %46, %47 in 1 : vector<16x64xf32>, vector<16x64xf32> -> vector<16x128xf32>
    %c0_26 = arith.constant 0 : index
    %c0_27 = arith.constant 0 : index
    %49 = vector.load %arg8[%c0_26, %c0_27] : memref<16x128xf32, #tpu.memory_space<vmem>>, vector<16x128xf32>
    tpu.vector_store %arg8[%c0_26, %c0_27], %48 {strides = array<i32>} : memref<16x128xf32, #tpu.memory_space<vmem>>, vector<16x128xf32>,
    return
  }
  func.func @transform_0(%arg0: i32) -> (i32, i32) {
    %c0_i32 = arith.constant 0 : i32
    %c0_i32_0 = arith.constant 0 : i32
    return %arg0, %c0_i32 : i32, i32
  }
  func.func @transform_1(%arg0: i32) -> (i32, i32) {
    %c0_i32 = arith.constant 0 : i32
    %c0_i32_0 = arith.constant 0 : i32
    %c0_i32_1 = arith.constant 0 : i32
    return %c0_i32, %c0_i32_0 : i32, i32
  }
  func.func @transform_2(%arg0: i32) -> (i32, i32) {
    %c0_i32 = arith.constant 0 : i32
    %c0_i32_0 = arith.constant 0 : i32
    %c0_i32_1 = arith.constant 0 : i32
    return %c0_i32, %c0_i32_0 : i32, i32
  }
  func.func @transform_3(%arg0: i32) -> (i32, i32) {
    %c0_i32 = arith.constant 0 : i32
    %c0_i32_0 = arith.constant 0 : i32
    %c0_i32_1 = arith.constant 0 : i32
    return %c0_i32, %c0_i32_0 : i32, i32
  }
  func.func @transform_4(%arg0: i32) -> (i32, i32) {
    %c0_i32 = arith.constant 0 : i32
    %c0_i32_0 = arith.constant 0 : i32
    %c0_i32_1 = arith.constant 0 : i32
    return %c0_i32, %c0_i32_0 : i32, i32
  }
  func.func @transform_5(%arg0: i32) -> (i32, i32) {
    %c0_i32 = arith.constant 0 : i32
    %c0_i32_0 = arith.constant 0 : i32
    %c0_i32_1 = arith.constant 0 : i32
    return %c0_i32, %c0_i32_0 : i32, i32
  }
  func.func @transform_6(%arg0: i32) -> (i32, i32) {
    %c0_i32 = arith.constant 0 : i32
    %c0_i32_0 = arith.constant 0 : i32
    %c0_i32_1 = arith.constant 0 : i32
    return %c0_i32, %c0_i32_0 : i32, i32
  }
  func.func @transform_7(%arg0: i32) -> (i32, i32) {
    %c0_i32 = arith.constant 0 : i32
    %c0_i32_0 = arith.constant 0 : i32
    return %arg0, %c0_i32 : i32, i32
  }
  func.func @transform_8(%arg0: i32) -> (i32, i32) {
    %c0_i32 = arith.constant 0 : i32
    %c0_i32_0 = arith.constant 0 : i32
    return %arg0, %c0_i32 : i32, i32
  }
  func.func @transform_9(%arg0: i32) -> (i32, i32) {
    %c0_i32 = arith.constant 0 : i32
    %c0_i32_0 = arith.constant 0 : i32
    return %arg0, %c0_i32 : i32, i32
  }
}

</mosaic_0001>

<llo_original>
// kernel: mlp_b_forward.1
$region0: #{mlp_b_forward.1}
  #allocation0 [shape = 'u32[]', space=smem, size = 0x4, offset = 0x4, fixed_abs, tag = 'smem constant byte address 0x4 - core index']
  #allocation1 [shape = 'u32[144,128]{1,0:T(1,128)}', space=vmem, size = 0x12000, scoped, tag = 'internal scratch']
  %s0 = inlined_call_operand.vmem [shape: f32[20,784], index: 0, kind: input, shape index: {}]
  %s1 = inlined_call_operand.vmem [shape: bf16[784,128], index: 1, kind: input, shape index: {}]
  %s2 = inlined_call_operand.vmem [shape: f32[1,128], index: 2, kind: input, shape index: {}]
  %s3 = inlined_call_operand.vmem [shape: bf16[128,128], index: 3, kind: input, shape index: {}]
  %s4 = inlined_call_operand.vmem [shape: f32[1,128], index: 4, kind: input, shape index: {}]
  %s5 = inlined_call_operand.vmem [shape: bf16[128,128], index: 5, kind: input, shape index: {}]
  %s6 = inlined_call_operand.vmem [shape: f32[1,128], index: 6, kind: input, shape index: {}]
  %s7 = inlined_call_operand.vmem [shape: f32[20,128], index: 7, kind: output, shape index: {0}]
  %s8 = inlined_call_operand.hbm [shape: f32[20,128], index: 8, kind: output, shape index: {1}]
  %s9 = inlined_call_operand.hbm [shape: f32[20,128], index: 9, kind: output, shape index: {2}]
  %10 = xla_tuple %s7, %s8, %s9
  %s11 = sld [smem:[#allocation0]]
  $region125: #{mlp_b_forward.1} parent=0
    _
  %s13 = ssub.s32 1, %s11
  %s14 = scalar_select 0, %s13, %s11
  $region1: #{mlp_b_forward.1} parent=0
    #allocation2 [shape = 'u8[16384]{0}', space=vmem, size = 0x4000, scoped, tag = 'output window, operand 0']
    #allocation3 [shape = 'u8[16384]{0}', space=vmem, size = 0x4000, scoped, tag = 'output window, operand 1']
    #allocation4 [shape = 's32[2]{0}', space=sflag, size = 0x8, scoped, tag = 'scoped memory for mlp_b_forward.1']
    #allocation5 [shape = 'u8[16384]{0}', space=vmem, size = 0x4000, scoped, tag = 'output window, operand 2']
    #allocation6 [shape = 's32[2]{0}', space=sflag, size = 0x8, scoped, tag = 'scoped memory for mlp_b_forward.1']
    %15 = vsyncpa [#allocation4], 0
    %s16 = scalar_lea.sflag [#allocation4], 1
    %17 = vsyncpa %s16, 0
    %18 = vsyncpa [#allocation6], 0
    %s19 = scalar_lea.sflag [#allocation6], 1
    %20 = vsyncpa %s19, 0
    loop: start=0, step=1, limit=4
    $region2: #{mlp_b_forward.1} parent=1 // loop_pre_header
      _
    $region3: #{mlp_b_forward.1} parent=1 // loop_header
      %s22 = sphi 0, %s26
      %p23 = scmp.ge.s32.totalorder %s22, 4
      %s32 = sphi 0, %s34
      %s35 = sphi 0, %s32
      %s36 = sphi 0, %s35
      %s52 = sphi 0, %s36
      %s56 = sphi 0, %s56
      %s58 = sphi 0, %s56
      %s59 = sphi 0, %s58
      %s73 = sphi 0, %s59
      %s77 = sphi 0, %s77
      %s79 = sphi 0, %s77
      %s80 = sphi 0, %s79
      %s94 = sphi 0, %s80
      %s98 = sphi 0, %s98
      %s100 = sphi 0, %s98
      %s101 = sphi 0, %s100
      %s115 = sphi 0, %s101
      %s119 = sphi 0, %s119
      %s121 = sphi 0, %s119
      %s122 = sphi 0, %s121
      %s136 = sphi 0, %s122
      %s140 = sphi 0, %s140
      %s142 = sphi 0, %s140
      %s143 = sphi 0, %s142
      %s157 = sphi 0, %s143
      %s161 = sphi 0, %s161
      %s163 = sphi 0, %s161
      %s164 = sphi 0, %s163
      %s178 = sphi 0, %s164
      %s184 = sphi 0, %s186
      %s187 = sphi 0, %s184
      %s188 = sphi 0, %s187
      %s204 = sphi 0, %s188
      %s210 = sphi 0, %s212
      %s213 = sphi 0, %s210
      %s214 = sphi 0, %s213
      %s230 = sphi 0, %s214
      %s236 = sphi 0, %s238
      %s239 = sphi 0, %s236
      %s240 = sphi 0, %s239
      %s256 = sphi 0, %s240
    $region4: #{mlp_b_forward.1} parent=1 // loop_header_branch
      %25 = sbr.rel (%p23) target = $region8
    $region5: #{mlp_b_forward.1} parent=1 // loop_body
      %s27 = ssub.s32 %s22, 1
      %s28 = ssub.s32 %s22, 2
      %s29 = sadd.s32 %s22, 1
      %s30 = ssub.s32 %s22, %s29
      %p31 = scmp.eq.s32.totalorder %s30, 0
      %s33 = sadd.s32 %s32, 1
      %s34 = scalar_select %p31, %s32, %s33
      %p37 = pneg %p31
      %p38 = scmp.eq.s32.totalorder %s22, 1
      %p39 = por %p37, %p38
      %p40 = scmp.ne.s32.totalorder %s32, %s35
      %p41 = scmp.eq.s32.totalorder %s22, 0
      %p42 = por %p40, %p41
      %p43 = scmp.ne.s32.totalorder %s32, %s35
      %p44 = scmp.eq.s32.totalorder %s27, 1
      %p45 = por %p43, %p44
      %p46 = scmp.ne.s32.totalorder %s35, %s36
      %p47 = scmp.eq.s32.totalorder %s27, 0
      %p48 = por %p46, %p47
      %p49 = scmp.ne.s32.totalorder %s35, %s36
      %p50 = scmp.eq.s32.totalorder %s28, 1
      %p51 = por %p49, %p50
      %p53 = scmp.ne.s32.totalorder %s36, %s52
      %p54 = scmp.eq.s32.totalorder %s28, 0
      %p55 = por %p53, %p54
      %s57 = sadd.s32 %s56, 1
      %p60 = scmp.eq.s32.totalorder %s22, 1
      %p61 = scmp.ne.s32.totalorder %s56, %s58
      %p62 = scmp.eq.s32.totalorder %s22, 0
      %p63 = por %p61, %p62
      %p64 = scmp.ne.s32.totalorder %s56, %s58
      %p65 = scmp.eq.s32.totalorder %s27, 1
      %p66 = por %p64, %p65
      %p67 = scmp.ne.s32.totalorder %s58, %s59
      %p68 = scmp.eq.s32.totalorder %s27, 0
      %p69 = por %p67, %p68
      %p70 = scmp.ne.s32.totalorder %s58, %s59
      %p71 = scmp.eq.s32.totalorder %s28, 1
      %p72 = por %p70, %p71
      %p74 = scmp.ne.s32.totalorder %s59, %s73
      %p75 = scmp.eq.s32.totalorder %s28, 0
      %p76 = por %p74, %p75
      %s78 = sadd.s32 %s77, 1
      %p81 = scmp.eq.s32.totalorder %s22, 1
      %p82 = scmp.ne.s32.totalorder %s77, %s79
      %p83 = scmp.eq.s32.totalorder %s22, 0
      %p84 = por %p82, %p83
      %p85 = scmp.ne.s32.totalorder %s77, %s79
      %p86 = scmp.eq.s32.totalorder %s27, 1
      %p87 = por %p85, %p86
      %p88 = scmp.ne.s32.totalorder %s79, %s80
      %p89 = scmp.eq.s32.totalorder %s27, 0
      %p90 = por %p88, %p89
      %p91 = scmp.ne.s32.totalorder %s79, %s80
      %p92 = scmp.eq.s32.totalorder %s28, 1
      %p93 = por %p91, %p92
      %p95 = scmp.ne.s32.totalorder %s80, %s94
      %p96 = scmp.eq.s32.totalorder %s28, 0
      %p97 = por %p95, %p96
      %s99 = sadd.s32 %s98, 1
      %p102 = scmp.eq.s32.totalorder %s22, 1
      %p103 = scmp.ne.s32.totalorder %s98, %s100
      %p104 = scmp.eq.s32.totalorder %s22, 0
      %p105 = por %p103, %p104
      %p106 = scmp.ne.s32.totalorder %s98, %s100
      %p107 = scmp.eq.s32.totalorder %s27, 1
      %p108 = por %p106, %p107
      %p109 = scmp.ne.s32.totalorder %s100, %s101
      %p110 = scmp.eq.s32.totalorder %s27, 0
      %p111 = por %p109, %p110
      %p112 = scmp.ne.s32.totalorder %s100, %s101
      %p113 = scmp.eq.s32.totalorder %s28, 1
      %p114 = por %p112, %p113
      %p116 = scmp.ne.s32.totalorder %s101, %s115
      %p117 = scmp.eq.s32.totalorder %s28, 0
      %p118 = por %p116, %p117
      %s120 = sadd.s32 %s119, 1
      %p123 = scmp.eq.s32.totalorder %s22, 1
      %p124 = scmp.ne.s32.totalorder %s119, %s121
      %p125 = scmp.eq.s32.totalorder %s22, 0
      %p126 = por %p124, %p125
      %p127 = scmp.ne.s32.totalorder %s119, %s121
      %p128 = scmp.eq.s32.totalorder %s27, 1
      %p129 = por %p127, %p128
      %p130 = scmp.ne.s32.totalorder %s121, %s122
      %p131 = scmp.eq.s32.totalorder %s27, 0
      %p132 = por %p130, %p131
      %p133 = scmp.ne.s32.totalorder %s121, %s122
      %p134 = scmp.eq.s32.totalorder %s28, 1
      %p135 = por %p133, %p134
      %p137 = scmp.ne.s32.totalorder %s122, %s136
      %p138 = scmp.eq.s32.totalorder %s28, 0
      %p139 = por %p137, %p138
      %s141 = sadd.s32 %s140, 1
      %p144 = scmp.eq.s32.totalorder %s22, 1
      %p145 = scmp.ne.s32.totalorder %s140, %s142
      %p146 = scmp.eq.s32.totalorder %s22, 0
      %p147 = por %p145, %p146
      %p148 = scmp.ne.s32.totalorder %s140, %s142
      %p149 = scmp.eq.s32.totalorder %s27, 1
      %p150 = por %p148, %p149
      %p151 = scmp.ne.s32.totalorder %s142, %s143
      %p152 = scmp.eq.s32.totalorder %s27, 0
      %p153 = por %p151, %p152
      %p154 = scmp.ne.s32.totalorder %s142, %s143
      %p155 = scmp.eq.s32.totalorder %s28, 1
      %p156 = por %p154, %p155
      %p158 = scmp.ne.s32.totalorder %s143, %s157
      %p159 = scmp.eq.s32.totalorder %s28, 0
      %p160 = por %p158, %p159
      %s162 = sadd.s32 %s161, 1
      %p165 = scmp.eq.s32.totalorder %s22, 1
      %p166 = scmp.ne.s32.totalorder %s161, %s163
      %p167 = scmp.eq.s32.totalorder %s22, 0
      %p168 = por %p166, %p167
      %p169 = scmp.ne.s32.totalorder %s161, %s163
      %p170 = scmp.eq.s32.totalorder %s27, 1
      %p171 = por %p169, %p170
      %p172 = scmp.ne.s32.totalorder %s163, %s164
      %p173 = scmp.eq.s32.totalorder %s27, 0
      %p174 = por %p172, %p173
      %p175 = scmp.ne.s32.totalorder %s163, %s164
      %p176 = scmp.eq.s32.totalorder %s28, 1
      %p177 = por %p175, %p176
      %p179 = scmp.ne.s32.totalorder %s164, %s178
      %p180 = scmp.eq.s32.totalorder %s28, 0
      %p181 = por %p179, %p180
      %s182 = ssub.s32 %s22, %s29
      %p183 = scmp.eq.s32.totalorder %s182, 0
      %s185 = sadd.s32 %s184, 1
      %s186 = scalar_select %p183, %s184, %s185
      %p189 = pneg %p183
      %p190 = scmp.eq.s32.totalorder %s22, 1
      %p191 = por %p189, %p190
      %p192 = scmp.ne.s32.totalorder %s184, %s187
      %p193 = scmp.eq.s32.totalorder %s22, 0
      %p194 = por %p192, %p193
      %p195 = scmp.ne.s32.totalorder %s184, %s187
      %p196 = scmp.eq.s32.totalorder %s27, 1
      %p197 = por %p195, %p196
      %p198 = scmp.ne.s32.totalorder %s187, %s188
      %p199 = scmp.eq.s32.totalorder %s27, 0
      %p200 = por %p198, %p199
      %p201 = scmp.ne.s32.totalorder %s187, %s188
      %p202 = scmp.eq.s32.totalorder %s28, 1
      %p203 = por %p201, %p202
      %p205 = scmp.ne.s32.totalorder %s188, %s204
      %p206 = scmp.eq.s32.totalorder %s28, 0
      %p207 = por %p205, %p206
      %s208 = ssub.s32 %s22, %s29
      %p209 = scmp.eq.s32.totalorder %s208, 0
      %s211 = sadd.s32 %s210, 1
      %s212 = scalar_select %p209, %s210, %s211
      %p215 = pneg %p209
      %p216 = scmp.eq.s32.totalorder %s22, 1
      %p217 = por %p215, %p216
      %p218 = scmp.ne.s32.totalorder %s210, %s213
      %p219 = scmp.eq.s32.totalorder %s22, 0
      %p220 = por %p218, %p219
      %p221 = scmp.ne.s32.totalorder %s210, %s213
      %p222 = scmp.eq.s32.totalorder %s27, 1
      %p223 = por %p221, %p222
      %p224 = scmp.ne.s32.totalorder %s213, %s214
      %p225 = scmp.eq.s32.totalorder %s27, 0
      %p226 = por %p224, %p225
      %p227 = scmp.ne.s32.totalorder %s213, %s214
      %p228 = scmp.eq.s32.totalorder %s28, 1
      %p229 = por %p227, %p228
      %p231 = scmp.ne.s32.totalorder %s214, %s230
      %p232 = scmp.eq.s32.totalorder %s28, 0
      %p233 = por %p231, %p232
      %s234 = ssub.s32 %s22, %s29
      %p235 = scmp.eq.s32.totalorder %s234, 0
      %s237 = sadd.s32 %s236, 1
      %s238 = scalar_select %p235, %s236, %s237
      %p241 = pneg %p235
      %p242 = scmp.eq.s32.totalorder %s22, 1
      %p243 = por %p241, %p242
      %p244 = scmp.ne.s32.totalorder %s236, %s239
      %p245 = scmp.eq.s32.totalorder %s22, 0
      %p246 = por %p244, %p245
      %p247 = scmp.ne.s32.totalorder %s236, %s239
      %p248 = scmp.eq.s32.totalorder %s27, 1
      %p249 = por %p247, %p248
      %p250 = scmp.ne.s32.totalorder %s239, %s240
      %p251 = scmp.eq.s32.totalorder %s27, 0
      %p252 = por %p250, %p251
      %p253 = scmp.ne.s32.totalorder %s239, %s240
      %p254 = scmp.eq.s32.totalorder %s28, 1
      %p255 = por %p253, %p254
      %p257 = scmp.ne.s32.totalorder %s240, %s256
      %p258 = scmp.eq.s32.totalorder %s28, 0
      %p259 = por %p257, %p258
      %p260 = scmp.le.s32.totalorder 1, %s22
      %p261 = scmp.lt.s32.totalorder %s22, 3
      %p262 = pnand %p260, %p261
      %p263 = pneg %p262
      // Predicated region
      $region9: #{mlp_b_forward.1} parent=5 // pred_check
        _
      $region10: #{mlp_b_forward.1} parent=5 // pred_check_branch
        %265 = sbr.rel (%p262) target = $region12
      $region11: #{mlp_b_forward.1} parent=5 // pred_region
        %s266 = ssub.s32 %s22, 1
        // Predicated region
        $region13: #{mlp_b_forward.1} parent=11 // pred_check
          %p267 = pneg %p69
        $region14: #{mlp_b_forward.1} parent=11 // pred_check_branch
          %269 = sbr.rel (%p267) target = $region16
        $region15: #{mlp_b_forward.1} parent=11 // pred_region
          _
        $region16: #{mlp_b_forward.1} parent=11 // pred_fallthru
          _
        // Predicated region
        $region17: #{mlp_b_forward.1} parent=11 // pred_check
          %p270 = pneg %p90
        $region18: #{mlp_b_forward.1} parent=11 // pred_check_branch
          %272 = sbr.rel (%p270) target = $region20
        $region19: #{mlp_b_forward.1} parent=11 // pred_region
          _
        $region20: #{mlp_b_forward.1} parent=11 // pred_fallthru
          _
        // Predicated region
        $region21: #{mlp_b_forward.1} parent=11 // pred_check
          %p273 = pneg %p111
        $region22: #{mlp_b_forward.1} parent=11 // pred_check_branch
          %275 = sbr.rel (%p273) target = $region24
        $region23: #{mlp_b_forward.1} parent=11 // pred_region
          _
        $region24: #{mlp_b_forward.1} parent=11 // pred_fallthru
          _
        // Predicated region
        $region25: #{mlp_b_forward.1} parent=11 // pred_check
          %p276 = pneg %p132
        $region26: #{mlp_b_forward.1} parent=11 // pred_check_branch
          %278 = sbr.rel (%p276) target = $region28
        $region27: #{mlp_b_forward.1} parent=11 // pred_region
          _
        $region28: #{mlp_b_forward.1} parent=11 // pred_fallthru
          _
        // Predicated region
        $region29: #{mlp_b_forward.1} parent=11 // pred_check
          %p279 = pneg %p153
        $region30: #{mlp_b_forward.1} parent=11 // pred_check_branch
          %281 = sbr.rel (%p279) target = $region32
        $region31: #{mlp_b_forward.1} parent=11 // pred_region
          _
        $region32: #{mlp_b_forward.1} parent=11 // pred_fallthru
          _
        // Predicated region
        $region33: #{mlp_b_forward.1} parent=11 // pred_check
          %p282 = pneg %p174
        $region34: #{mlp_b_forward.1} parent=11 // pred_check_branch
          %284 = sbr.rel (%p282) target = $region36
        $region35: #{mlp_b_forward.1} parent=11 // pred_region
          _
        $region36: #{mlp_b_forward.1} parent=11 // pred_fallthru
          _
      $region12: #{mlp_b_forward.1} parent=5 // pred_fallthru
        _
      %p285 = scmp.lt.s32.totalorder %s22, 2
      // Predicated region
      $region37: #{mlp_b_forward.1} parent=5 // pred_check
        %p286 = pneg %p285
      $region38: #{mlp_b_forward.1} parent=5 // pred_check_branch
        %288 = sbr.rel (%p286) target = $region40
      $region39: #{mlp_b_forward.1} parent=5 // pred_region
        // Predicated region
        $region41: #{mlp_b_forward.1} parent=39 // pred_check
          %p289 = pneg %p42
        $region42: #{mlp_b_forward.1} parent=39 // pred_check_branch
          %291 = sbr.rel (%p289) target = $region44
        $region43: #{mlp_b_forward.1} parent=39 // pred_region
          %s292 = smul.u32 2, %s22
          %s293 = ssub.s32 3, %s292
          %p294 = scmp.lt.s32.totalorder %s293, 2
          %s295 = scalar_select %p294, %s293, 2
          %s296 = smul.u32 128, %s295
          %s297 = smul.u32 %s296, 7
          %p298 = scmp.lt.s32.totalorder %s292, 2
          %s299 = scalar_select %p298, %s292, 2
          %s300 = smul.addr %s299, 7
          %s301 = smul.addr %s300, 8
          %s302 = scalar_lea.vmem %s0, %s301
          %s303 = smul.u32 2, %s22
          %s304 = ssub.s32 3, %s303
          %p305 = scmp.lt.s32.totalorder %s304, 2
          %s306 = scalar_select %p305, %s304, 2
          %s307 = smul.u32 128, %s306
          %s308 = smul.u32 %s307, 7
        $region44: #{mlp_b_forward.1} parent=39 // pred_fallthru
          _
      $region40: #{mlp_b_forward.1} parent=5 // pred_fallthru
        _
      %p309 = scmp.le.s32.totalorder 1, %s22
      %p310 = scmp.lt.s32.totalorder %s22, 3
      %p311 = pnand %p309, %p310
      %p312 = pneg %p311
      // Predicated region
      $region45: #{mlp_b_forward.1} parent=5 // pred_check
        _
      $region46: #{mlp_b_forward.1} parent=5 // pred_check_branch
        %314 = sbr.rel (%p311) target = $region48
      $region47: #{mlp_b_forward.1} parent=5 // pred_region
        %s315 = ssub.s32 %s22, 1
        %s316 = smul.u32 2, %s27
        %s317 = ssub.s32 3, %s316
        %p318 = scmp.lt.s32.totalorder %s317, 2
        %s319 = scalar_select %p318, %s317, 2
        %s320 = smul.u32 128, %s319
        %s321 = smul.u32 %s320, 7
        %p322 = scmp.lt.s32.totalorder %s316, 2
        %s323 = scalar_select %p322, %s316, 2
        %s324 = smul.addr %s323, 7
        %s325 = smul.addr %s324, 8
        %s326 = scalar_lea.vmem %s0, %s325
        %p327 = pneg %p48
        %p328 = pneg %p45
        %p329 = pneg %p69
        %p330 = pneg %p66
        %p331 = pneg %p90
        %p332 = pneg %p87
        %p333 = pneg %p111
        %p334 = pneg %p108
        %p335 = pneg %p132
        %p336 = pneg %p129
        %p337 = pneg %p153
        %p338 = pneg %p150
        %p339 = pneg %p174
        %p340 = pneg %p171
        %p341 = pneg %p200
        %p342 = pneg %p197
        %s343 = sand.u32 %s187, 1
        %s344 = sand.u32 %s187, 1
        %s345 = smul.addr %s344, 16
        %s346 = scalar_lea.vmem [#allocation2], %s345
        %p347 = pneg %p226
        %p348 = pneg %p223
        %s349 = sand.u32 %s213, 1
        %s350 = scalar_lea.sflag [#allocation4], %s349
        %s351 = sand.u32 %s213, 1
        %s352 = smul.addr %s351, 16
        %s353 = scalar_lea.vmem [#allocation3], %s352
        %p354 = pneg %p252
        %p355 = pneg %p249
        %s356 = sand.u32 %s239, 1
        %s357 = scalar_lea.sflag [#allocation6], %s356
        %s358 = sand.u32 %s239, 1
        %s359 = smul.addr %s358, 16
        %s360 = scalar_lea.vmem [#allocation5], %s359
        %s361 = smul.u32 2, %s27
        %s362 = ssub.s32 3, %s361
        %p363 = scmp.lt.s32.totalorder %s362, 2
        %s364 = scalar_select %p363, %s362, 2
        %s365 = smul.u32 128, %s364
        %s366 = smul.u32 %s365, 7
        %p367 = scmp.lt.s32.totalorder %s361, 2
        %s368 = scalar_select %p367, %s361, 2
        %s369 = smul.addr %s368, 7
        %s370 = smul.addr %s369, 8
        %s371 = scalar_lea.vmem %s0, %s370
        %s372 = smul.u32 2, %s27
        %s373 = ssub.s32 3, %s372
        %p374 = scmp.lt.s32.totalorder %s373, 2
        %s375 = scalar_select %p374, %s373, 2
        %s376 = smul.u32 128, %s375
        %s377 = smul.u32 %s376, 7
        %s378 = smul.u32 2, %s27
        %s379 = ssub.s32 3, %s378
        %p380 = scmp.lt.s32.totalorder %s379, 2
        %s381 = scalar_select %p380, %s379, 2
        %s382 = smul.u32 128, %s381
        %s383 = smul.u32 2, %s27
        %s384 = ssub.s32 3, %s383
        %p385 = scmp.lt.s32.totalorder %s384, 2
        %s386 = scalar_select %p385, %s384, 2
        %s387 = smul.u32 128, %s386
        %s388 = smul.u32 2, %s27
        %s389 = ssub.s32 3, %s388
        %p390 = scmp.lt.s32.totalorder %s389, 2
        %s391 = scalar_select %p390, %s389, 2
        %s392 = smul.u32 128, %s391
        %v394 = vld [vmem:[%s371] sm:$0xff]
        %v395 = vld [vmem:[%s371 + $0x8] sm:$0xff]
        %v396 = vld [vmem:[%s371 + $0x10] sm:$0xff]
        %v397 = vld [vmem:[%s371 + $0x18] sm:$0xff]
        %v398 = vld [vmem:[%s371 + $0x20] sm:$0xff]
        %v399 = vld [vmem:[%s371 + $0x28] sm:$0xff]
        %v400 = vld [vmem:[%s371 + $0x30] sm:$0xff]
        %v401 = vld [vmem:[%s371 + $0x38] sm:$0xff]
        %v402 = vld [vmem:[%s371 + $0x40] sm:$0xff]
        %v403 = vld [vmem:[%s371 + $0x48] sm:$0xff]
        %v404 = vld [vmem:[%s371 + $0x50] sm:$0xff]
        %v405 = vld [vmem:[%s371 + $0x58] sm:$0xff]
        %v406 = vld [vmem:[%s371 + $0x60] sm:$0xff]
        %v407 = vld [vmem:[%s371 + $0x68] sm:$0xff]
        %v408 = vpack.c.bf16 %v401, %v394
        %v409 = vpack.c.bf16 %v402, %v395
        %v410 = vpack.c.bf16 %v403, %v396
        %v411 = vpack.c.bf16 %v404, %v397
        %v412 = vpack.c.bf16 %v405, %v398
        %v413 = vpack.c.bf16 %v406, %v399
        %v414 = vpack.c.bf16 %v407, %v400
        %v415 = vld [vmem:[%s1] sm:$0xf]
        %v416 = vld [vmem:[%s1 + $0x4] sm:$0xf]
        %v417 = vld [vmem:[%s1 + $0x8] sm:$0xf]
        %v418 = vld [vmem:[%s1 + $0xc] sm:$0xf]
        %v419 = vld [vmem:[%s1 + $0x10] sm:$0xf]
        %v420 = vld [vmem:[%s1 + $0x14] sm:$0xf]
        %v421 = vld [vmem:[%s1 + $0x18] sm:$0xf]
        %v422 = vld [vmem:[%s1 + $0x1c] sm:$0xf]
        %v423 = vld [vmem:[%s1 + $0x20] sm:$0xf]
        %v424 = vld [vmem:[%s1 + $0x24] sm:$0xf]
        %v425 = vld [vmem:[%s1 + $0x28] sm:$0xf]
        %v426 = vld [vmem:[%s1 + $0x2c] sm:$0xf]
        %v427 = vld [vmem:[%s1 + $0x30] sm:$0xf]
        %v428 = vld [vmem:[%s1 + $0x34] sm:$0xf]
        %v429 = vld [vmem:[%s1 + $0x38] sm:$0xf]
        %v430 = vld [vmem:[%s1 + $0x3c] sm:$0xf]
        %v431 = vld [vmem:[%s1 + $0x40] sm:$0xf]
        %v432 = vld [vmem:[%s1 + $0x44] sm:$0xf]
        %v433 = vld [vmem:[%s1 + $0x48] sm:$0xf]
        %v434 = vld [vmem:[%s1 + $0x4c] sm:$0xf]
        %v435 = vld [vmem:[%s1 + $0x50] sm:$0xf]
        %v436 = vld [vmem:[%s1 + $0x54] sm:$0xf]
        %v437 = vld [vmem:[%s1 + $0x58] sm:$0xf]
        %v438 = vld [vmem:[%s1 + $0x5c] sm:$0xf]
        %v439 = vld [vmem:[%s1 + $0x60] sm:$0xf]
        %v440 = vld [vmem:[%s1 + $0x64] sm:$0xf]
        %v441 = vld [vmem:[%s1 + $0x68] sm:$0xf]
        %v442 = vld [vmem:[%s1 + $0x6c] sm:$0xf]
        %v443 = vld [vmem:[%s1 + $0x70] sm:$0xf]
        %v444 = vld [vmem:[%s1 + $0x74] sm:$0xf]
        %v445 = vld [vmem:[%s1 + $0x78] sm:$0xf]
        %v446 = vld [vmem:[%s1 + $0x7c] sm:$0xf]
        %v447 = vld [vmem:[%s1 + $0x80] sm:$0xf]
        %v448 = vld [vmem:[%s1 + $0x84] sm:$0xf]
        %v449 = vld [vmem:[%s1 + $0x88] sm:$0xf]
        %v450 = vld [vmem:[%s1 + $0x8c] sm:$0xf]
        %v451 = vld [vmem:[%s1 + $0x90] sm:$0xf]
        %v452 = vld [vmem:[%s1 + $0x94] sm:$0xf]
        %v453 = vld [vmem:[%s1 + $0x98] sm:$0xf]
        %v454 = vld [vmem:[%s1 + $0x9c] sm:$0xf]
        %v455 = vld [vmem:[%s1 + $0xa0] sm:$0xf]
        %v456 = vld [vmem:[%s1 + $0xa4] sm:$0xf]
        %v457 = vld [vmem:[%s1 + $0xa8] sm:$0xf]
        %v458 = vld [vmem:[%s1 + $0xac] sm:$0xf]
        %v459 = vld [vmem:[%s1 + $0xb0] sm:$0xf]
        %v460 = vld [vmem:[%s1 + $0xb4] sm:$0xf]
        %v461 = vld [vmem:[%s1 + $0xb8] sm:$0xf]
        %v462 = vld [vmem:[%s1 + $0xbc] sm:$0xf]
        %v463 = vld [vmem:[%s1 + $0xc0] sm:$0xf]
        %v464 = vld [vmem:[%s1 + $0xc4] sm:$0xf]
        %v465 = vld [vmem:[%s1 + $0xc8] sm:$0xf]
        %v466 = vld [vmem:[%s1 + $0xcc] sm:$0xf]
        %v467 = vld [vmem:[%s1 + $0xd0] sm:$0xf]
        %v468 = vld [vmem:[%s1 + $0xd4] sm:$0xf]
        %v469 = vld [vmem:[%s1 + $0xd8] sm:$0xf]
        %v470 = vld [vmem:[%s1 + $0xdc] sm:$0xf]
        %v471 = vld [vmem:[%s1 + $0xe0] sm:$0xf]
        %v472 = vld [vmem:[%s1 + $0xe4] sm:$0xf]
        %v473 = vld [vmem:[%s1 + $0xe8] sm:$0xf]
        %v474 = vld [vmem:[%s1 + $0xec] sm:$0xf]
        %v475 = vld [vmem:[%s1 + $0xf0] sm:$0xf]
        %v476 = vld [vmem:[%s1 + $0xf4] sm:$0xf]
        %v477 = vld [vmem:[%s1 + $0xf8] sm:$0xf]
        %v478 = vld [vmem:[%s1 + $0xfc] sm:$0xf]
        %v479 = vld [vmem:[%s1 + $0x100] sm:$0xf]
        %v480 = vld [vmem:[%s1 + $0x104] sm:$0xf]
        %v481 = vld [vmem:[%s1 + $0x108] sm:$0xf]
        %v482 = vld [vmem:[%s1 + $0x10c] sm:$0xf]
        %v483 = vld [vmem:[%s1 + $0x110] sm:$0xf]
        %v484 = vld [vmem:[%s1 + $0x114] sm:$0xf]
        %v485 = vld [vmem:[%s1 + $0x118] sm:$0xf]
        %v486 = vld [vmem:[%s1 + $0x11c] sm:$0xf]
        %v487 = vld [vmem:[%s1 + $0x120] sm:$0xf]
        %v488 = vld [vmem:[%s1 + $0x124] sm:$0xf]
        %v489 = vld [vmem:[%s1 + $0x128] sm:$0xf]
        %v490 = vld [vmem:[%s1 + $0x12c] sm:$0xf]
        %v491 = vld [vmem:[%s1 + $0x130] sm:$0xf]
        %v492 = vld [vmem:[%s1 + $0x134] sm:$0xf]
        %v493 = vld [vmem:[%s1 + $0x138] sm:$0xf]
        %v494 = vld [vmem:[%s1 + $0x13c] sm:$0xf]
        %v495 = vld [vmem:[%s1 + $0x140] sm:$0xf]
        %v496 = vld [vmem:[%s1 + $0x144] sm:$0xf]
        %v497 = vld [vmem:[%s1 + $0x148] sm:$0xf]
        %v498 = vld [vmem:[%s1 + $0x14c] sm:$0xf]
        %v499 = vld [vmem:[%s1 + $0x150] sm:$0xf]
        %v500 = vld [vmem:[%s1 + $0x154] sm:$0xf]
        %v501 = vld [vmem:[%s1 + $0x158] sm:$0xf]
        %v502 = vld [vmem:[%s1 + $0x15c] sm:$0xf]
        %v503 = vld [vmem:[%s1 + $0x160] sm:$0xf]
        %v504 = vld [vmem:[%s1 + $0x164] sm:$0xf]
        %v505 = vld [vmem:[%s1 + $0x168] sm:$0xf]
        %v506 = vld [vmem:[%s1 + $0x16c] sm:$0xf]
        %v507 = vld [vmem:[%s1 + $0x170] sm:$0xf]
        %v508 = vld [vmem:[%s1 + $0x174] sm:$0xf]
        %v509 = vld [vmem:[%s1 + $0x178] sm:$0xf]
        %v510 = vld [vmem:[%s1 + $0x17c] sm:$0xf]
        %v511 = vld [vmem:[%s1 + $0x180] sm:$0xf]
        %v512 = vld [vmem:[%s1 + $0x184] sm:$0xf]
        %v513 = vld [vmem:[%s2] sm:$0x1]
        %v515 = vlaneseq
        %v516 = vshrl.u32 %v515, 7
        %v517 = vsub.s32 0, %v516
        %v518 = vrot.slane %v513, %v517
        %v618 = vunpack.c.l.b16 %v415
        %v619 = vunpack.c.l.b16 %v416
        %v620 = vunpack.c.l.b16 %v417
        %v621 = vunpack.c.l.b16 %v418
        %v622 = vunpack.c.l.b16 %v419
        %v623 = vunpack.c.l.b16 %v420
        %v624 = vunpack.c.l.b16 %v421
        %v625 = vunpack.c.l.b16 %v422
        %v626 = vunpack.c.l.b16 %v423
        %v627 = vunpack.c.l.b16 %v424
        %v628 = vunpack.c.l.b16 %v425
        %v629 = vunpack.c.l.b16 %v426
        %v630 = vunpack.c.l.b16 %v427
        %v631 = vunpack.c.l.b16 %v428
        %v632 = vunpack.c.l.b16 %v429
        %v633 = vunpack.c.l.b16 %v430
        %v634 = vunpack.c.l.b16 %v431
        %v635 = vunpack.c.l.b16 %v432
        %v636 = vunpack.c.l.b16 %v433
        %v637 = vunpack.c.l.b16 %v434
        %v638 = vunpack.c.l.b16 %v435
        %v639 = vunpack.c.l.b16 %v436
        %v640 = vunpack.c.l.b16 %v437
        %v641 = vunpack.c.l.b16 %v438
        %v642 = vunpack.c.l.b16 %v439
        %v643 = vunpack.c.l.b16 %v440
        %v644 = vunpack.c.l.b16 %v441
        %v645 = vunpack.c.l.b16 %v442
        %v646 = vunpack.c.l.b16 %v443
        %v647 = vunpack.c.l.b16 %v444
        %v648 = vunpack.c.l.b16 %v445
        %v649 = vunpack.c.l.b16 %v446
        %v650 = vunpack.c.l.b16 %v447
        %v651 = vunpack.c.l.b16 %v448
        %v652 = vunpack.c.l.b16 %v449
        %v653 = vunpack.c.l.b16 %v450
        %v654 = vunpack.c.l.b16 %v451
        %v655 = vunpack.c.l.b16 %v452
        %v656 = vunpack.c.l.b16 %v453
        %v657 = vunpack.c.l.b16 %v454
        %v658 = vunpack.c.l.b16 %v455
        %v659 = vunpack.c.l.b16 %v456
        %v660 = vunpack.c.l.b16 %v457
        %v661 = vunpack.c.l.b16 %v458
        %v662 = vunpack.c.l.b16 %v459
        %v663 = vunpack.c.l.b16 %v460
        %v664 = vunpack.c.l.b16 %v461
        %v665 = vunpack.c.l.b16 %v462
        %v666 = vunpack.c.l.b16 %v463
        %v667 = vunpack.c.l.b16 %v464
        %v668 = vunpack.c.l.b16 %v465
        %v669 = vunpack.c.l.b16 %v466
        %v670 = vunpack.c.l.b16 %v467
        %v671 = vunpack.c.l.b16 %v468
        %v672 = vunpack.c.l.b16 %v469
        %v673 = vunpack.c.l.b16 %v470
        %v674 = vunpack.c.l.b16 %v471
        %v675 = vunpack.c.l.b16 %v472
        %v676 = vunpack.c.l.b16 %v473
        %v677 = vunpack.c.l.b16 %v474
        %v678 = vunpack.c.l.b16 %v475
        %v679 = vunpack.c.l.b16 %v476
        %v680 = vunpack.c.l.b16 %v477
        %v681 = vunpack.c.l.b16 %v478
        %v682 = vunpack.c.l.b16 %v479
        %v683 = vunpack.c.l.b16 %v480
        %v684 = vunpack.c.l.b16 %v481
        %v685 = vunpack.c.l.b16 %v482
        %v686 = vunpack.c.l.b16 %v483
        %v687 = vunpack.c.l.b16 %v484
        %v688 = vunpack.c.l.b16 %v485
        %v689 = vunpack.c.l.b16 %v486
        %v690 = vunpack.c.l.b16 %v487
        %v691 = vunpack.c.l.b16 %v488
        %v692 = vunpack.c.l.b16 %v489
        %v693 = vunpack.c.l.b16 %v490
        %v694 = vunpack.c.l.b16 %v491
        %v695 = vunpack.c.l.b16 %v492
        %v696 = vunpack.c.l.b16 %v493
        %v697 = vunpack.c.l.b16 %v494
        %v698 = vunpack.c.l.b16 %v495
        %v699 = vunpack.c.l.b16 %v496
        %v700 = vunpack.c.l.b16 %v497
        %v701 = vunpack.c.l.b16 %v498
        %v702 = vunpack.c.l.b16 %v499
        %v703 = vunpack.c.l.b16 %v500
        %v704 = vunpack.c.l.b16 %v501
        %v705 = vunpack.c.l.b16 %v502
        %v706 = vunpack.c.l.b16 %v503
        %v707 = vunpack.c.l.b16 %v504
        %v708 = vunpack.c.l.b16 %v505
        %v709 = vunpack.c.l.b16 %v506
        %v710 = vunpack.c.l.b16 %v507
        %v711 = vunpack.c.l.b16 %v508
        %v712 = vunpack.c.l.b16 %v509
        %v713 = vunpack.c.l.b16 %v510
        %v714 = vunpack.c.l.b16 %v511
        %v715 = vunpack.c.l.b16 %v512
        %v716 = vpack.c.b16 %v619, %v618
        %v717 = vpack.c.b16 %v621, %v620
        %v718 = vpack.c.b16 %v623, %v622
        %v719 = vpack.c.b16 %v625, %v624
        %v720 = vpack.c.b16 %v627, %v626
        %v721 = vpack.c.b16 %v629, %v628
        %v722 = vpack.c.b16 %v631, %v630
        %v723 = vpack.c.b16 %v633, %v632
        %v724 = vpack.c.b16 %v635, %v634
        %v725 = vpack.c.b16 %v637, %v636
        %v726 = vpack.c.b16 %v639, %v638
        %v727 = vpack.c.b16 %v641, %v640
        %v728 = vpack.c.b16 %v643, %v642
        %v729 = vpack.c.b16 %v645, %v644
        %v730 = vpack.c.b16 %v647, %v646
        %v731 = vpack.c.b16 %v649, %v648
        %v732 = vpack.c.b16 %v651, %v650
        %v733 = vpack.c.b16 %v653, %v652
        %v734 = vpack.c.b16 %v655, %v654
        %v735 = vpack.c.b16 %v657, %v656
        %v736 = vpack.c.b16 %v659, %v658
        %v737 = vpack.c.b16 %v661, %v660
        %v738 = vpack.c.b16 %v663, %v662
        %v739 = vpack.c.b16 %v665, %v664
        %v740 = vpack.c.b16 %v667, %v666
        %v741 = vpack.c.b16 %v669, %v668
        %v742 = vpack.c.b16 %v671, %v670
        %v743 = vpack.c.b16 %v673, %v672
        %v744 = vpack.c.b16 %v675, %v674
        %v745 = vpack.c.b16 %v677, %v676
        %v746 = vpack.c.b16 %v679, %v678
        %v747 = vpack.c.b16 %v681, %v680
        %v748 = vpack.c.b16 %v683, %v682
        %v749 = vpack.c.b16 %v685, %v684
        %v750 = vpack.c.b16 %v687, %v686
        %v751 = vpack.c.b16 %v689, %v688
        %v752 = vpack.c.b16 %v691, %v690
        %v753 = vpack.c.b16 %v693, %v692
        %v754 = vpack.c.b16 %v695, %v694
        %v755 = vpack.c.b16 %v697, %v696
        %v756 = vpack.c.b16 %v699, %v698
        %v757 = vpack.c.b16 %v701, %v700
        %v758 = vpack.c.b16 %v703, %v702
        %v759 = vpack.c.b16 %v705, %v704
        %v760 = vpack.c.b16 %v707, %v706
        %v761 = vpack.c.b16 %v709, %v708
        %v762 = vpack.c.b16 %v711, %v710
        %v763 = vpack.c.b16 %v713, %v712
        %v764 = vpack.c.b16 %v715, %v714
        %vm814 = vcmask 130048
        %v816 = vsel %vm814, %v414, 0
        %818 = vmatprep.subr.bf16.mxu0 0
        %819 = vmatpush1.bf16.msra.mxu0 %v716
        %820 = vmatprep.subr.bf16.mxu0 0
        %821 = vmatpush1.bf16.msra.mxu0 %v717
        %822 = vmatprep.subr.bf16.mxu0 0
        %823 = vmatpush1.bf16.msra.mxu0 %v718
        %824 = vmatprep.subr.bf16.mxu0 0
        %825 = vmatpush1.bf16.msra.mxu0 %v719
        %826 = vmatprep.subr.bf16.mxu0 0
        %827 = vmatpush1.bf16.msra.mxu0 %v720
        %828 = vmatprep.subr.bf16.mxu0 0
        %829 = vmatpush1.bf16.msra.mxu0 %v721
        %830 = vmatprep.subr.bf16.mxu0 0
        %831 = vmatpush1.bf16.msra.mxu0 %v722
        %832 = vmatprep.subr.bf16.mxu0 0
        %833 = vmatpush1.bf16.msra.mxu0 %v723
        %834 = vmatprep.subr.bf16.mxu0 0
        %835 = vmatpush1.bf16.msra.mxu0 %v724
        %836 = vmatprep.subr.bf16.mxu0 0
        %837 = vmatpush1.bf16.msra.mxu0 %v725
        %838 = vmatprep.subr.bf16.mxu0 0
        %839 = vmatpush1.bf16.msra.mxu0 %v726
        %840 = vmatprep.subr.bf16.mxu0 0
        %841 = vmatpush1.bf16.msra.mxu0 %v727
        %842 = vmatprep.subr.bf16.mxu0 0
        %843 = vmatpush1.bf16.msra.mxu0 %v728
        %844 = vmatprep.subr.bf16.mxu0 0
        %845 = vmatpush1.bf16.msra.mxu0 %v729
        %846 = vmatprep.subr.bf16.mxu0 0
        %847 = vmatpush1.bf16.msra.mxu0 %v730
        %848 = vmatprep.subr.bf16.mxu0 0
        %849 = vmatpush1.bf16.msra.mxu0 %v731
        %850 = vmatprep.mubr.bf16.mxu0 %v409
        %851 = vmatmul.mubr.bf16.gmra.mrb[0].mxu0 %v408
        %v852 = vpop.f32.mrb[0].mxu0
        %v853 = vadd.f32 %v518, %v852
        %v854 = vpop.f32.mrb[0].mxu0
        %v855 = vpop.f32.mrb[0].mxu0
        %v856 = vadd.f32 %v518, %v855
        %v857 = vpop.f32.mrb[0].mxu0
        %858 = vdwg.mxu0
        %859 = vmatprep.subr.bf16.mxu0 0
        %860 = vmatpush1.bf16.msra.mxu0 %v732
        %861 = vmatprep.subr.bf16.mxu0 0
        %862 = vmatpush1.bf16.msra.mxu0 %v733
        %863 = vmatprep.subr.bf16.mxu0 0
        %864 = vmatpush1.bf16.msra.mxu0 %v734
        %865 = vmatprep.subr.bf16.mxu0 0
        %866 = vmatpush1.bf16.msra.mxu0 %v735
        %867 = vmatprep.subr.bf16.mxu0 0
        %868 = vmatpush1.bf16.msra.mxu0 %v736
        %869 = vmatprep.subr.bf16.mxu0 0
        %870 = vmatpush1.bf16.msra.mxu0 %v737
        %871 = vmatprep.subr.bf16.mxu0 0
        %872 = vmatpush1.bf16.msra.mxu0 %v738
        %873 = vmatprep.subr.bf16.mxu0 0
        %874 = vmatpush1.bf16.msra.mxu0 %v739
        %875 = vmatprep.subr.bf16.mxu0 0
        %876 = vmatpush1.bf16.msra.mxu0 %v740
        %877 = vmatprep.subr.bf16.mxu0 0
        %878 = vmatpush1.bf16.msra.mxu0 %v741
        %879 = vmatprep.subr.bf16.mxu0 0
        %880 = vmatpush1.bf16.msra.mxu0 %v742
        %881 = vmatprep.subr.bf16.mxu0 0
        %882 = vmatpush1.bf16.msra.mxu0 %v743
        %883 = vmatprep.subr.bf16.mxu0 0
        %884 = vmatpush1.bf16.msra.mxu0 %v744
        %885 = vmatprep.subr.bf16.mxu0 0
        %886 = vmatpush1.bf16.msra.mxu0 %v745
        %887 = vmatprep.subr.bf16.mxu0 0
        %888 = vmatpush1.bf16.msra.mxu0 %v746
        %889 = vmatprep.subr.bf16.mxu0 0
        %890 = vmatpush1.bf16.msra.mxu0 %v747
        %891 = vmatprep.mubr.bf16.mxu0 %v411
        %892 = vmatmul.mubr.bf16.gmra.mrb[0].mxu0 %v410
        %v893 = vpop.f32.mrb[0].mxu0
        %v894 = vadd.f32 %v853, %v893
        %v895 = vpop.f32.mrb[0].mxu0
        %v896 = vpop.f32.mrb[0].mxu0
        %v897 = vadd.f32 %v856, %v896
        %v898 = vpop.f32.mrb[0].mxu0
        %899 = vdwg.mxu0
        %900 = vmatprep.subr.bf16.mxu0 0
        %901 = vmatpush1.bf16.msra.mxu0 %v748
        %902 = vmatprep.subr.bf16.mxu0 0
        %903 = vmatpush1.bf16.msra.mxu0 %v749
        %904 = vmatprep.subr.bf16.mxu0 0
        %905 = vmatpush1.bf16.msra.mxu0 %v750
        %906 = vmatprep.subr.bf16.mxu0 0
        %907 = vmatpush1.bf16.msra.mxu0 %v751
        %908 = vmatprep.subr.bf16.mxu0 0
        %909 = vmatpush1.bf16.msra.mxu0 %v752
        %910 = vmatprep.subr.bf16.mxu0 0
        %911 = vmatpush1.bf16.msra.mxu0 %v753
        %912 = vmatprep.subr.bf16.mxu0 0
        %913 = vmatpush1.bf16.msra.mxu0 %v754
        %914 = vmatprep.subr.bf16.mxu0 0
        %915 = vmatpush1.bf16.msra.mxu0 %v755
        %916 = vmatprep.subr.bf16.mxu0 0
        %917 = vmatpush1.bf16.msra.mxu0 %v756
        %918 = vmatprep.subr.bf16.mxu0 0
        %919 = vmatpush1.bf16.msra.mxu0 %v757
        %920 = vmatprep.subr.bf16.mxu0 0
        %921 = vmatpush1.bf16.msra.mxu0 %v758
        %922 = vmatprep.subr.bf16.mxu0 0
        %923 = vmatpush1.bf16.msra.mxu0 %v759
        %924 = vmatprep.subr.bf16.mxu0 0
        %925 = vmatpush1.bf16.msra.mxu0 %v760
        %926 = vmatprep.subr.bf16.mxu0 0
        %927 = vmatpush1.bf16.msra.mxu0 %v761
        %928 = vmatprep.subr.bf16.mxu0 0
        %929 = vmatpush1.bf16.msra.mxu0 %v762
        %930 = vmatprep.subr.bf16.mxu0 0
        %931 = vmatpush1.bf16.msra.mxu0 %v763
        %932 = vmatprep.mubr.bf16.mxu0 %v413
        %933 = vmatmul.mubr.bf16.gmra.mrb[0].mxu0 %v412
        %v934 = vpop.f32.mrb[0].mxu0
        %v935 = vadd.f32 %v894, %v934
        %v936 = vpop.f32.mrb[0].mxu0
        %v937 = vpop.f32.mrb[0].mxu0
        %v938 = vadd.f32 %v897, %v937
        %v939 = vpop.f32.mrb[0].mxu0
        %940 = vdwg.mxu0
        %941 = vmatprep.subr.bf16.mxu0 0
        %942 = vmatpush1.bf16.msra.mxu0 %v764
        %943 = vmatprep.subr.bf16.mxu0 0
        %944 = vmatpush1.bf16.msra.mxu0 0
        %945 = vmatprep.subr.bf16.mxu0 0
        %946 = vmatpush1.bf16.msra.mxu0 0
        %947 = vmatprep.subr.bf16.mxu0 0
        %948 = vmatpush1.bf16.msra.mxu0 0
        %949 = vmatprep.subr.bf16.mxu0 0
        %950 = vmatpush1.bf16.msra.mxu0 0
        %951 = vmatprep.subr.bf16.mxu0 0
        %952 = vmatpush1.bf16.msra.mxu0 0
        %953 = vmatprep.subr.bf16.mxu0 0
        %954 = vmatpush1.bf16.msra.mxu0 0
        %955 = vmatprep.subr.bf16.mxu0 0
        %956 = vmatpush1.bf16.msra.mxu0 0
        %957 = vmatprep.subr.bf16.mxu0 0
        %958 = vmatpush1.bf16.msra.mxu0 0
        %959 = vmatprep.subr.bf16.mxu0 0
        %960 = vmatpush1.bf16.msra.mxu0 0
        %961 = vmatprep.subr.bf16.mxu0 0
        %962 = vmatpush1.bf16.msra.mxu0 0
        %963 = vmatprep.subr.bf16.mxu0 0
        %964 = vmatpush1.bf16.msra.mxu0 0
        %965 = vmatprep.subr.bf16.mxu0 0
        %966 = vmatpush1.bf16.msra.mxu0 0
        %967 = vmatprep.subr.bf16.mxu0 0
        %968 = vmatpush1.bf16.msra.mxu0 0
        %969 = vmatprep.subr.bf16.mxu0 0
        %970 = vmatpush1.bf16.msra.mxu0 0
        %971 = vmatprep.subr.bf16.mxu0 0
        %972 = vmatpush1.bf16.msra.mxu0 0
        %973 = vmatprep.mubr.bf16.mxu0 0
        %974 = vmatmul.mubr.bf16.gmra.mrb[0].mxu0 %v816
        %v975 = vpop.f32.mrb[0].mxu0
        %v976 = vadd.f32 %v935, %v975
        %v977 = vpop.f32.mrb[0].mxu0
        %v978 = vpop.f32.mrb[0].mxu0
        %v979 = vadd.f32 %v938, %v978
        %v980 = vpop.f32.mrb[0].mxu0
        %981 = vdwg.mxu0
        %982 = vst [vmem:[%s353] sm:$0xff] %v976
        %983 = vst [vmem:[%s353 + $0x8] sm:$0xff] %v979
        %v984 = vmax.f32 %v976, 0.0
        %v985 = vmax.f32 %v979, 0.0
        %v986 = vpack.c.bf16 %v985, %v984
        %v987 = vld [vmem:[%s3] sm:$0xf]
        %v988 = vld [vmem:[%s3 + $0x4] sm:$0xf]
        %v989 = vld [vmem:[%s3 + $0x8] sm:$0xf]
        %v990 = vld [vmem:[%s3 + $0xc] sm:$0xf]
        %v991 = vld [vmem:[%s3 + $0x10] sm:$0xf]
        %v992 = vld [vmem:[%s3 + $0x14] sm:$0xf]
        %v993 = vld [vmem:[%s3 + $0x18] sm:$0xf]
        %v994 = vld [vmem:[%s3 + $0x1c] sm:$0xf]
        %v995 = vld [vmem:[%s3 + $0x20] sm:$0xf]
        %v996 = vld [vmem:[%s3 + $0x24] sm:$0xf]
        %v997 = vld [vmem:[%s3 + $0x28] sm:$0xf]
        %v998 = vld [vmem:[%s3 + $0x2c] sm:$0xf]
        %v999 = vld [vmem:[%s3 + $0x30] sm:$0xf]
        %v1000 = vld [vmem:[%s3 + $0x34] sm:$0xf]
        %v1001 = vld [vmem:[%s3 + $0x38] sm:$0xf]
        %v1002 = vld [vmem:[%s3 + $0x3c] sm:$0xf]
        %v1003 = vld [vmem:[%s4] sm:$0x1]
        %v1005 = vlaneseq
        %v1006 = vshrl.u32 %v1005, 7
        %v1007 = vsub.s32 0, %v1006
        %v1008 = vrot.slane %v1003, %v1007
        %v1026 = vunpack.c.l.b16 %v987
        %v1027 = vunpack.c.l.b16 %v988
        %v1028 = vunpack.c.l.b16 %v989
        %v1029 = vunpack.c.l.b16 %v990
        %v1030 = vunpack.c.l.b16 %v991
        %v1031 = vunpack.c.l.b16 %v992
        %v1032 = vunpack.c.l.b16 %v993
        %v1033 = vunpack.c.l.b16 %v994
        %v1034 = vunpack.c.l.b16 %v995
        %v1035 = vunpack.c.l.b16 %v996
        %v1036 = vunpack.c.l.b16 %v997
        %v1037 = vunpack.c.l.b16 %v998
        %v1038 = vunpack.c.l.b16 %v999
        %v1039 = vunpack.c.l.b16 %v1000
        %v1040 = vunpack.c.l.b16 %v1001
        %v1041 = vunpack.c.l.b16 %v1002
        %v1042 = vpack.c.b16 %v1027, %v1026
        %v1043 = vpack.c.b16 %v1029, %v1028
        %v1044 = vpack.c.b16 %v1031, %v1030
        %v1045 = vpack.c.b16 %v1033, %v1032
        %v1046 = vpack.c.b16 %v1035, %v1034
        %v1047 = vpack.c.b16 %v1037, %v1036
        %v1048 = vpack.c.b16 %v1039, %v1038
        %v1049 = vpack.c.b16 %v1041, %v1040
        %1058 = vmatprep.subr.bf16.mxu0 0
        %1059 = vmatpush1.bf16.msra.mxu0 %v1042
        %1060 = vmatprep.subr.bf16.mxu0 0
        %1061 = vmatpush1.bf16.msra.mxu0 %v1043
        %1062 = vmatprep.subr.bf16.mxu0 0
        %1063 = vmatpush1.bf16.msra.mxu0 %v1044
        %1064 = vmatprep.subr.bf16.mxu0 0
        %1065 = vmatpush1.bf16.msra.mxu0 %v1045
        %1066 = vmatprep.subr.bf16.mxu0 0
        %1067 = vmatpush1.bf16.msra.mxu0 %v1046
        %1068 = vmatprep.subr.bf16.mxu0 0
        %1069 = vmatpush1.bf16.msra.mxu0 %v1047
        %1070 = vmatprep.subr.bf16.mxu0 0
        %1071 = vmatpush1.bf16.msra.mxu0 %v1048
        %1072 = vmatprep.subr.bf16.mxu0 0
        %1073 = vmatpush1.bf16.msra.mxu0 %v1049
        %1074 = vmatprep.subr.bf16.mxu0 0
        %1075 = vmatpush1.bf16.msra.mxu0 0
        %1076 = vmatprep.subr.bf16.mxu0 0
        %1077 = vmatpush1.bf16.msra.mxu0 0
        %1078 = vmatprep.subr.bf16.mxu0 0
        %1079 = vmatpush1.bf16.msra.mxu0 0
        %1080 = vmatprep.subr.bf16.mxu0 0
        %1081 = vmatpush1.bf16.msra.mxu0 0
        %1082 = vmatprep.subr.bf16.mxu0 0
        %1083 = vmatpush1.bf16.msra.mxu0 0
        %1084 = vmatprep.subr.bf16.mxu0 0
        %1085 = vmatpush1.bf16.msra.mxu0 0
        %1086 = vmatprep.subr.bf16.mxu0 0
        %1087 = vmatpush1.bf16.msra.mxu0 0
        %1088 = vmatprep.subr.bf16.mxu0 0
        %1089 = vmatpush1.bf16.msra.mxu0 0
        %1090 = vmatprep.mubr.bf16.mxu0 0
        %1091 = vmatmul.mubr.bf16.gmra.mrb[0].mxu0 %v986
        %v1092 = vpop.f32.mrb[0].mxu0
        %v1093 = vadd.f32 %v1008, %v1092
        %v1094 = vpop.f32.mrb[0].mxu0
        %v1095 = vpop.f32.mrb[0].mxu0
        %v1096 = vadd.f32 %v1008, %v1095
        %v1097 = vpop.f32.mrb[0].mxu0
        %1098 = vdwg.mxu0
        %1099 = vst [vmem:[%s360] sm:$0xff] %v1093
        %1100 = vst [vmem:[%s360 + $0x8] sm:$0xff] %v1096
        %v1101 = vmax.f32 %v1093, 0.0
        %v1102 = vmax.f32 %v1096, 0.0
        %v1103 = vpack.c.bf16 %v1102, %v1101
        %v1104 = vld [vmem:[%s5] sm:$0xf]
        %v1105 = vld [vmem:[%s5 + $0x4] sm:$0xf]
        %v1106 = vld [vmem:[%s5 + $0x8] sm:$0xf]
        %v1107 = vld [vmem:[%s5 + $0xc] sm:$0xf]
        %v1108 = vld [vmem:[%s5 + $0x10] sm:$0xf]
        %v1109 = vld [vmem:[%s5 + $0x14] sm:$0xf]
        %v1110 = vld [vmem:[%s5 + $0x18] sm:$0xf]
        %v1111 = vld [vmem:[%s5 + $0x1c] sm:$0xf]
        %v1112 = vld [vmem:[%s5 + $0x20] sm:$0xf]
        %v1113 = vld [vmem:[%s5 + $0x24] sm:$0xf]
        %v1114 = vld [vmem:[%s5 + $0x28] sm:$0xf]
        %v1115 = vld [vmem:[%s5 + $0x2c] sm:$0xf]
        %v1116 = vld [vmem:[%s5 + $0x30] sm:$0xf]
        %v1117 = vld [vmem:[%s5 + $0x34] sm:$0xf]
        %v1118 = vld [vmem:[%s5 + $0x38] sm:$0xf]
        %v1119 = vld [vmem:[%s5 + $0x3c] sm:$0xf]
        %v1120 = vld [vmem:[%s6] sm:$0x1]
        %v1122 = vlaneseq
        %v1123 = vshrl.u32 %v1122, 7
        %v1124 = vsub.s32 0, %v1123
        %v1125 = vrot.slane %v1120, %v1124
        %v1143 = vunpack.c.l.b16 %v1104
        %v1144 = vunpack.c.l.b16 %v1105
        %v1145 = vunpack.c.l.b16 %v1106
        %v1146 = vunpack.c.l.b16 %v1107
        %v1147 = vunpack.c.l.b16 %v1108
        %v1148 = vunpack.c.l.b16 %v1109
        %v1149 = vunpack.c.l.b16 %v1110
        %v1150 = vunpack.c.l.b16 %v1111
        %v1151 = vunpack.c.l.b16 %v1112
        %v1152 = vunpack.c.l.b16 %v1113
        %v1153 = vunpack.c.l.b16 %v1114
        %v1154 = vunpack.c.l.b16 %v1115
        %v1155 = vunpack.c.l.b16 %v1116
        %v1156 = vunpack.c.l.b16 %v1117
        %v1157 = vunpack.c.l.b16 %v1118
        %v1158 = vunpack.c.l.b16 %v1119
        %v1159 = vpack.c.b16 %v1144, %v1143
        %v1160 = vpack.c.b16 %v1146, %v1145
        %v1161 = vpack.c.b16 %v1148, %v1147
        %v1162 = vpack.c.b16 %v1150, %v1149
        %v1163 = vpack.c.b16 %v1152, %v1151
        %v1164 = vpack.c.b16 %v1154, %v1153
        %v1165 = vpack.c.b16 %v1156, %v1155
        %v1166 = vpack.c.b16 %v1158, %v1157
        %1175 = vmatprep.subr.bf16.mxu0 0
        %1176 = vmatpush1.bf16.msra.mxu0 %v1159
        %1177 = vmatprep.subr.bf16.mxu0 0
        %1178 = vmatpush1.bf16.msra.mxu0 %v1160
        %1179 = vmatprep.subr.bf16.mxu0 0
        %1180 = vmatpush1.bf16.msra.mxu0 %v1161
        %1181 = vmatprep.subr.bf16.mxu0 0
        %1182 = vmatpush1.bf16.msra.mxu0 %v1162
        %1183 = vmatprep.subr.bf16.mxu0 0
        %1184 = vmatpush1.bf16.msra.mxu0 %v1163
        %1185 = vmatprep.subr.bf16.mxu0 0
        %1186 = vmatpush1.bf16.msra.mxu0 %v1164
        %1187 = vmatprep.subr.bf16.mxu0 0
        %1188 = vmatpush1.bf16.msra.mxu0 %v1165
        %1189 = vmatprep.subr.bf16.mxu0 0
        %1190 = vmatpush1.bf16.msra.mxu0 %v1166
        %1191 = vmatprep.subr.bf16.mxu0 0
        %1192 = vmatpush1.bf16.msra.mxu0 0
        %1193 = vmatprep.subr.bf16.mxu0 0
        %1194 = vmatpush1.bf16.msra.mxu0 0
        %1195 = vmatprep.subr.bf16.mxu0 0
        %1196 = vmatpush1.bf16.msra.mxu0 0
        %1197 = vmatprep.subr.bf16.mxu0 0
        %1198 = vmatpush1.bf16.msra.mxu0 0
        %1199 = vmatprep.subr.bf16.mxu0 0
        %1200 = vmatpush1.bf16.msra.mxu0 0
        %1201 = vmatprep.subr.bf16.mxu0 0
        %1202 = vmatpush1.bf16.msra.mxu0 0
        %1203 = vmatprep.subr.bf16.mxu0 0
        %1204 = vmatpush1.bf16.msra.mxu0 0
        %1205 = vmatprep.subr.bf16.mxu0 0
        %1206 = vmatpush1.bf16.msra.mxu0 0
        %1207 = vmatprep.mubr.bf16.mxu0 0
        %1208 = vmatmul.mubr.bf16.gmra.mrb[0].mxu0 %v1103
        %v1209 = vpop.f32.mrb[0].mxu0
        %v1210 = vadd.f32 %v1125, %v1209
        %v1211 = vpop.f32.mrb[0].mxu0
        %v1212 = vpop.f32.mrb[0].mxu0
        %v1213 = vadd.f32 %v1125, %v1212
        %v1214 = vpop.f32.mrb[0].mxu0
        %1215 = vdwg.mxu0
        %v1216 = vlaneseq
        %v1217 = vand.u32 %v1216, 127
        %vm1218 = vcmp.lt.s32.totalorder %v1217, 10
        %v1219 = vsel %vm1218, %v1210, -inf
        %v1220 = vsel %vm1218, %v1213, -inf
        %1221 = vmax.xlane.f32.xlu0 %v1219
        %v1222 = vpop.xlane.xlu0 %1221
        %1223 = vmax.xlane.f32.xlu0 %v1220
        %v1224 = vpop.xlane.xlu0 %1223
        %v1225 = vsub.f32 %v1210, %v1222
        %v1226 = vsub.f32 %v1213, %v1224
        %v1227 = vmul.f32 %v1225, 1.442695
        %v1228 = vpow.pop %v1227
        %v1229 = vmul.f32 %v1226, 1.442695
        %v1230 = vpow.pop %v1229
        %v1231 = vsel %vm1218, %v1228, 0.0
        %v1232 = vsel %vm1218, %v1230, 0.0
        %1233 = vadd.xlane.f32.xlu0 %v1231
        %v1234 = vpop.xlane.xlu0 %1233
        %1235 = vadd.xlane.f32.xlu0 %v1232
        %v1236 = vpop.xlane.xlu0 %1235
        %v1237 = vrcp.pop %v1234
        %v1238 = vrcp.pop %v1236
        %v1239 = vmul.f32 %v1234, %v1237
        %v1240 = vmul.f32 %v1236, %v1238
        %v1241 = vsub.f32 2.0, %v1239
        %v1242 = vsub.f32 2.0, %v1240
        %v1243 = vmul.f32 %v1237, %v1241
        %v1244 = vmul.f32 %v1238, %v1242
        %v1245 = vmul.f32 %v1231, %v1243
        %v1246 = vmul.f32 %v1232, %v1244
        %1249 = vrot.lane.b32.xlu0 %v1210, 64
        %v1250 = vpop.permute.xlu0 %1249
        %1251 = vrot.lane.b32.xlu0 %v1213, 64
        %v1252 = vpop.permute.xlu0 %1251
        %vm1255 = vcmask 523264
        %v1256 = vsel %vm1255, %v1245, %v1250
        %v1257 = vsel %vm1255, %v1246, %v1252
        %1258 = vst [vmem:[%s346] sm:$0xff] %v1256
        %1259 = vst [vmem:[%s346 + $0x8] sm:$0xff] %v1257
        %s1260 = sand.u32 %s187, 1
        %s1261 = sand.u32 %s187, 1
        %s1262 = smul.addr %s1261, 16
        %s1263 = scalar_lea.vmem [#allocation2], %s1262
        %s1264 = sand.u32 %s213, 1
        %s1265 = scalar_lea.sflag [#allocation4], %s1264
        %s1266 = sand.u32 %s213, 1
        %s1267 = smul.addr %s1266, 16
        %s1268 = scalar_lea.vmem [#allocation3], %s1267
        %s1269 = sand.u32 %s239, 1
        %s1270 = scalar_lea.sflag [#allocation6], %s1269
        %s1271 = sand.u32 %s239, 1
        %s1272 = smul.addr %s1271, 16
        %s1273 = scalar_lea.vmem [#allocation5], %s1272
        // Predicated region
        $region49: #{mlp_b_forward.1} parent=47 // pred_check
          %p1274 = pneg %p197
        $region50: #{mlp_b_forward.1} parent=47 // pred_check_branch
          %1276 = sbr.rel (%p1274) target = $region52
        $region51: #{mlp_b_forward.1} parent=47 // pred_region
          %s1277 = smul.u32 2, %s27
          %s1278 = ssub.s32 3, %s1277
          %p1279 = scmp.lt.s32.totalorder %s1278, 2
          %s1280 = scalar_select %p1279, %s1278, 2
          %s1281 = smul.u32 128, %s1280
          %p1282 = scmp.ne.s32.totalorder 0, %s1281
          %s1283 = smul.addr %s1277, 8
          %s1284 = scalar_lea.vmem %s7, %s1283
          // Predicated region
          $region53: #{mlp_b_forward.1} parent=51 // pred_check
            %p1285 = pneg %p1282
          $region54: #{mlp_b_forward.1} parent=51 // pred_check_branch
            %1287 = sbr.rel (%p1285) target = $region56
          $region55: #{mlp_b_forward.1} parent=51 // pred_region
            // Predicated region
            $region57: #{mlp_b_forward.1} parent=55 // pred_check
              _
            $region58: #{mlp_b_forward.1} parent=55 // pred_check_branch
              %1289 = sbr.rel (0) target = $region60
            $region59: #{mlp_b_forward.1} parent=55 // pred_region
              // Predicated region
              $region79: #{mlp_b_forward.1} parent=59 // pred_check
                _
              $region80: #{mlp_b_forward.1} parent=59 // pred_check_branch
                %1340 = sbr.rel (0) target = $region82
              $region81: #{mlp_b_forward.1} parent=59 // pred_region
                %s1341 = sshrl.u32 %s1280, 1
                // While loop
                $region83: #{mlp_b_forward.1} parent=81 // loop_pre_header
                  _
                $region84: #{mlp_b_forward.1} parent=81 // loop_header
                  %s1343 = sphi 0, %s1345
                  %p1344 = scmp.ge.s32.totalorder %s1343, %s1341
                  %s1348 = sphi 0, %s1357
                  %s1349 = sphi %s1263, %s1360
                  %s1350 = sphi %s1284, %s1361
                $region85: #{mlp_b_forward.1} parent=81 // loop_header_branch
                  %1347 = sbr.rel (%p1344) target = $region89
                $region86: #{mlp_b_forward.1} parent=81 // loop_body
                  %v1351 = vld [vmem:[%s1349] sm:$0xff]
                  %1352 = vst [vmem:[%s1350] sm:$0xff] %v1351
                  %v1353 = vld [vmem:[%s1349 + $0x8] sm:$0xff]
                  %1354 = vst [vmem:[%s1350 + $0x8] sm:$0xff] %v1353
                  %s1355 = sadd.s32 1, %s1348
                  %p1356 = scmp.ge.s32.totalorder %s1355, %s1341
                  %s1357 = scalar_select %p1356, 0, %s1355
                  %s1358 = smul.u32 %s1357, 16
                  %s1359 = smul.u32 %s1357, 16
                  %s1360 = scalar_lea.vmem %s1263, %s1358 [#allocation2]
                  %s1361 = scalar_lea.vmem %s1284, %s1359
                $region87: #{mlp_b_forward.1} parent=81 // loop_footer
                  %s1345 = sadd.s32 %s1343, 1
                $region88: #{mlp_b_forward.1} parent=81 // loop_footer_branch
                  %1342 = sbr.rel target = $region84
                $region89: #{mlp_b_forward.1} parent=81 // loop_exit
                  _
                %s1362 = sshrl.u32 %s1280, 1
                %s1363 = sand.u32 %s1280, 1
                %s1364 = smul.u32 %s1362, 2
                %s1365 = smul.u32 8, %s1364
                %s1366 = scalar_lea.vmem %s1263, %s1365 [#allocation2]
                %s1367 = smul.u32 8, %s1364
                %s1368 = scalar_lea.vmem %s1284, %s1367
                // While loop
                $region90: #{mlp_b_forward.1} parent=81 // loop_pre_header
                  _
                $region91: #{mlp_b_forward.1} parent=81 // loop_header
                  %s1370 = sphi 0, %s1372
                  %p1371 = scmp.ge.s32.totalorder %s1370, %s1363
                  %s1375 = sphi 0, %s1382
                  %s1376 = sphi %s1366, %s1385
                  %s1377 = sphi %s1368, %s1386
                $region92: #{mlp_b_forward.1} parent=81 // loop_header_branch
                  %1374 = sbr.rel (%p1371) target = $region96
                $region93: #{mlp_b_forward.1} parent=81 // loop_body
                  %v1378 = vld [vmem:[%s1376] sm:$0xff]
                  %1379 = vst [vmem:[%s1377] sm:$0xff] %v1378
                  %s1380 = sadd.s32 1, %s1375
                  %p1381 = scmp.ge.s32.totalorder %s1380, %s1363
                  %s1382 = scalar_select %p1381, 0, %s1380
                  %s1383 = smul.u32 %s1382, 8
                  %s1384 = smul.u32 %s1382, 8
                  %s1385 = scalar_lea.vmem %s1366, %s1383 [#allocation2]
                  %s1386 = scalar_lea.vmem %s1368, %s1384
                $region94: #{mlp_b_forward.1} parent=81 // loop_footer
                  %s1372 = sadd.s32 %s1370, 1
                $region95: #{mlp_b_forward.1} parent=81 // loop_footer_branch
                  %1369 = sbr.rel target = $region91
                $region96: #{mlp_b_forward.1} parent=81 // loop_exit
                  _
              $region82: #{mlp_b_forward.1} parent=59 // pred_fallthru
                _
              // Predicated region
              $region97: #{mlp_b_forward.1} parent=59 // pred_check
                _
              $region98: #{mlp_b_forward.1} parent=59 // pred_check_branch
                %1388 = sbr.rel target = $region100
              $region99: #{mlp_b_forward.1} parent=59 // pred_region
                _
              $region100: #{mlp_b_forward.1} parent=59 // pred_fallthru
                _
            $region60: #{mlp_b_forward.1} parent=55 // pred_fallthru
              _
            // Predicated region
            $region61: #{mlp_b_forward.1} parent=55 // pred_check
              _
            $region62: #{mlp_b_forward.1} parent=55 // pred_check_branch
              %1291 = sbr.rel target = $region64
            $region63: #{mlp_b_forward.1} parent=55 // pred_region
              %s1293 = sshrl.u32 %s1280, 1
              // While loop
              $region65: #{mlp_b_forward.1} parent=63 // loop_pre_header
                _
              $region66: #{mlp_b_forward.1} parent=63 // loop_header
                %s1295 = sphi 0, %s1297
                %p1296 = scmp.ge.s32.totalorder %s1295, %s1293
                %s1300 = sphi 0, %s1309
                %s1301 = sphi %s1263, %s1312
                %s1302 = sphi %s1284, %s1313
              $region67: #{mlp_b_forward.1} parent=63 // loop_header_branch
                %1299 = sbr.rel (%p1296) target = $region71
              $region68: #{mlp_b_forward.1} parent=63 // loop_body
                %v1303 = vld [vmem:[%s1301] sm:$0xff]
                %1304 = vst [vmem:[%s1302] sm:$0xff] %v1303
                %v1305 = vld [vmem:[%s1301 + $0x8] sm:$0xff]
                %1306 = vst [vmem:[%s1302 + $0x8] sm:$0xff] %v1305
                %s1307 = sadd.s32 1, %s1300
                %p1308 = scmp.ge.s32.totalorder %s1307, %s1293
                %s1309 = scalar_select %p1308, 0, %s1307
                %s1310 = smul.u32 %s1309, 16
                %s1311 = smul.u32 %s1309, 16
                %s1312 = scalar_lea.vmem %s1263, %s1310 [#allocation2]
                %s1313 = scalar_lea.vmem %s1284, %s1311
              $region69: #{mlp_b_forward.1} parent=63 // loop_footer
                %s1297 = sadd.s32 %s1295, 1
              $region70: #{mlp_b_forward.1} parent=63 // loop_footer_branch
                %1294 = sbr.rel target = $region66
              $region71: #{mlp_b_forward.1} parent=63 // loop_exit
                _
              %s1314 = sshrl.u32 %s1280, 1
              %s1315 = sand.u32 %s1280, 1
              %s1316 = smul.u32 %s1314, 2
              %s1317 = smul.u32 8, %s1316
              %s1318 = scalar_lea.vmem %s1263, %s1317 [#allocation2]
              %s1319 = smul.u32 8, %s1316
              %s1320 = scalar_lea.vmem %s1284, %s1319
              // While loop
              $region72: #{mlp_b_forward.1} parent=63 // loop_pre_header
                _
              $region73: #{mlp_b_forward.1} parent=63 // loop_header
                %s1322 = sphi 0, %s1324
                %p1323 = scmp.ge.s32.totalorder %s1322, %s1315
                %s1327 = sphi 0, %s1334
                %s1328 = sphi %s1318, %s1337
                %s1329 = sphi %s1320, %s1338
              $region74: #{mlp_b_forward.1} parent=63 // loop_header_branch
                %1326 = sbr.rel (%p1323) target = $region78
              $region75: #{mlp_b_forward.1} parent=63 // loop_body
                %v1330 = vld [vmem:[%s1328] sm:$0xff]
                %1331 = vst [vmem:[%s1329] sm:$0xff] %v1330
                %s1332 = sadd.s32 1, %s1327
                %p1333 = scmp.ge.s32.totalorder %s1332, %s1315
                %s1334 = scalar_select %p1333, 0, %s1332
                %s1335 = smul.u32 %s1334, 8
                %s1336 = smul.u32 %s1334, 8
                %s1337 = scalar_lea.vmem %s1318, %s1335 [#allocation2]
                %s1338 = scalar_lea.vmem %s1320, %s1336
              $region76: #{mlp_b_forward.1} parent=63 // loop_footer
                %s1324 = sadd.s32 %s1322, 1
              $region77: #{mlp_b_forward.1} parent=63 // loop_footer_branch
                %1321 = sbr.rel target = $region73
              $region78: #{mlp_b_forward.1} parent=63 // loop_exit
                _
            $region64: #{mlp_b_forward.1} parent=55 // pred_fallthru
              _
          $region56: #{mlp_b_forward.1} parent=51 // pred_fallthru
            _
          %1389 = vnop
        $region52: #{mlp_b_forward.1} parent=47 // pred_fallthru
          _
        // Predicated region
        $region101: #{mlp_b_forward.1} parent=47 // pred_check
          %p1390 = pneg %p223
        $region102: #{mlp_b_forward.1} parent=47 // pred_check_branch
          %1392 = sbr.rel (%p1390) target = $region104
        $region103: #{mlp_b_forward.1} parent=47 // pred_region
          %s1393 = smul.u32 2, %s27
          %s1394 = ssub.s32 3, %s1393
          %p1395 = scmp.lt.s32.totalorder %s1394, 2
          %s1396 = scalar_select %p1395, %s1394, 2
          %s1397 = smul.u32 128, %s1396
          %s1399 = ssub.s32 256, %s1397
          %1400 = vsyncadd %s1265, %s1399
          %p1401 = scmp.ne.s32.totalorder 0, %s1397
          %s1402 = smul.addr %s1393, 128
          %s1403 = scalar_lea.hbm %s8, %s1402
          %s1404 = smul.u32 8, %s1396
          %s1405 = sshll.u32 %s1268, 4
          %s1406 = int_to_ptr.vmem [resolvable:$true] %s1405
          %s1407 = sshll.u32 %s1404, 4
          %1411 = dma.vmem_to_hbm [thread:$0]  (%p1401), %s1406, %s1407, %s1403, %s1265, 128, 128, 8
        $region104: #{mlp_b_forward.1} parent=47 // pred_fallthru
          _
        // Predicated region
        $region105: #{mlp_b_forward.1} parent=47 // pred_check
          %p1412 = pneg %p249
        $region106: #{mlp_b_forward.1} parent=47 // pred_check_branch
          %1414 = sbr.rel (%p1412) target = $region108
        $region107: #{mlp_b_forward.1} parent=47 // pred_region
          %s1415 = smul.u32 2, %s27
          %s1416 = ssub.s32 3, %s1415
          %p1417 = scmp.lt.s32.totalorder %s1416, 2
          %s1418 = scalar_select %p1417, %s1416, 2
          %s1419 = smul.u32 128, %s1418
          %s1421 = ssub.s32 256, %s1419
          %1422 = vsyncadd %s1270, %s1421
          %p1423 = scmp.ne.s32.totalorder 0, %s1419
          %s1424 = smul.addr %s1415, 128
          %s1425 = scalar_lea.hbm %s9, %s1424
          %s1426 = smul.u32 8, %s1418
          %s1427 = sshll.u32 %s1273, 4
          %s1428 = int_to_ptr.vmem [resolvable:$true] %s1427
          %s1429 = sshll.u32 %s1426, 4
          %1433 = dma.vmem_to_hbm [thread:$0]  (%p1423), %s1428, %s1429, %s1425, %s1270, 128, 128, 8
        $region108: #{mlp_b_forward.1} parent=47 // pred_fallthru
          _
      $region48: #{mlp_b_forward.1} parent=5 // pred_fallthru
        _
      %p1434 = scmp.le.s32.totalorder 2, %s22
      // Predicated region
      $region109: #{mlp_b_forward.1} parent=5 // pred_check
        %p1435 = pneg %p1434
      $region110: #{mlp_b_forward.1} parent=5 // pred_check_branch
        %1437 = sbr.rel (%p1435) target = $region112
      $region111: #{mlp_b_forward.1} parent=5 // pred_region
        %s1438 = ssub.s32 %s22, 2
        // Predicated region
        $region113: #{mlp_b_forward.1} parent=111 // pred_check
          %p1439 = pneg %p203
        $region114: #{mlp_b_forward.1} parent=111 // pred_check_branch
          %1441 = sbr.rel (%p1439) target = $region116
        $region115: #{mlp_b_forward.1} parent=111 // pred_region
          %s1442 = sand.u32 %s188, 1
          %s1443 = sand.u32 %s188, 1
          %s1444 = smul.addr %s1443, 16
          %s1445 = scalar_lea.vmem [#allocation2], %s1444
        $region116: #{mlp_b_forward.1} parent=111 // pred_fallthru
          _
        // Predicated region
        $region117: #{mlp_b_forward.1} parent=111 // pred_check
          %p1446 = pneg %p229
        $region118: #{mlp_b_forward.1} parent=111 // pred_check_branch
          %1448 = sbr.rel (%p1446) target = $region120
        $region119: #{mlp_b_forward.1} parent=111 // pred_region
          %s1449 = sand.u32 %s214, 1
          %s1450 = scalar_lea.sflag [#allocation4], %s1449
          %s1451 = sand.u32 %s214, 1
          %s1452 = smul.addr %s1451, 16
          %s1453 = scalar_lea.vmem [#allocation3], %s1452
          %1454 = dma.done %s1450, 256
        $region120: #{mlp_b_forward.1} parent=111 // pred_fallthru
          _
        // Predicated region
        $region121: #{mlp_b_forward.1} parent=111 // pred_check
          %p1455 = pneg %p255
        $region122: #{mlp_b_forward.1} parent=111 // pred_check_branch
          %1457 = sbr.rel (%p1455) target = $region124
        $region123: #{mlp_b_forward.1} parent=111 // pred_region
          %s1458 = sand.u32 %s240, 1
          %s1459 = scalar_lea.sflag [#allocation6], %s1458
          %s1460 = sand.u32 %s240, 1
          %s1461 = smul.addr %s1460, 16
          %s1462 = scalar_lea.vmem [#allocation5], %s1461
          %1463 = dma.done %s1459, 256
        $region124: #{mlp_b_forward.1} parent=111 // pred_fallthru
          _
      $region112: #{mlp_b_forward.1} parent=5 // pred_fallthru
        _
    $region6: #{mlp_b_forward.1} parent=1 // loop_footer
      %s26 = sadd.s32 1, %s22
    $region7: #{mlp_b_forward.1} parent=1 // loop_footer_branch
      %21 = sbr.rel target = $region3
    $region8: #{mlp_b_forward.1} parent=1 // loop_exit
      _
    %1464 = vsyncpa [#allocation4], 1
    %s1465 = scalar_lea.sflag [#allocation4], 1
    %1466 = vsyncpa %s1465, 1
    %1467 = vsyncpa [#allocation6], 1
    %s1468 = scalar_lea.sflag [#allocation6], 1
    %1469 = vsyncpa %s1468, 1

</llo_original>
